<compile_context>
chip_gen: v5e
topology: v5e:2x2
jax: 0.10.0
libtpu: 0.0.40
codegen_flags: <defaults>
</compile_context>

<pallas_src>
import math
import functools
import numpy as np
import jax
import jax.numpy as jnp
from jax import lax
from jax.experimental import pallas as pl
from jax.experimental.pallas import tpu as pltpu


# ----------------------------------------------------------------------------
# In-kernel helper: single-pass complex BN (batch stats) + complex ReLU,
# operating in the lane-folded layout.
# ----------------------------------------------------------------------------
def _bn_relu_folded(yr, yi, g, b, *, width, cout, n_samples):
    """yr/yi: (M, width*cout), lane index = w*cout + co (channel innermost).

    g: (3, width*cout) = [w_rr, w_ii, w_ri] tiled across w.
    b: (2, width*cout) = [b_r, b_i] tiled across w.
    """
    eps = 1e-5
    wc = width * cout
    inv_n = 1.0 / float(n_samples)

    def per_channel_sum(v):
        # Reduce over samples (sublane axis)...
        s = jnp.sum(v, axis=0, keepdims=True)                     # (1, wc)
        # ...then over the w groups inside the lane dim via cyclic roll butterflies
        # (XLU slot, nearly free).  After covering all `width` offsets every lane
        # holds the per-channel total, already broadcast across w.
        if width & (width - 1) == 0:
            shift = cout
            while shift < wc:
                s = s + pltpu.roll(s, shift, axis=1)
                shift *= 2
        else:
            acc = s
            for k in range(1, width):
                acc = acc + pltpu.roll(s, k * cout, axis=1)
            s = acc
        return s

    # Raw moments in ONE pass over y (no centering pass, no materialized x - mean).
    sr, si = per_channel_sum(yr), per_channel_sum(yi)
    srr = per_channel_sum(yr * yr)
    sii = per_channel_sum(yi * yi)
    sri = per_channel_sum(yr * yi)

    mr, mi = sr * inv_n, si * inv_n
    crr = srr * inv_n - mr * mr + eps
    cii = sii * inv_n - mi * mi + eps
    cri = sri * inv_n - mr * mi

    s_ = jnp.sqrt(crr * cii - cri * cri)
    t_ = jnp.sqrt(crr + cii + 2.0 * s_)
    inv_st = 1.0 / (s_ * t_)          # (1, wc) vector math: negligible, exact f32
    rrr = (cii + s_) * inv_st
    rii = (crr + s_) * inv_st
    rri = -cri * inv_st

    g0, g1, g2 = g[0:1, :], g[1:2, :], g[2:3, :]
    b0, b1 = b[0:1, :], b[1:2, :]

    # Fold mean-subtraction + whitening + affine into per-lane constants:
    #   zr = arr*yr + ari*yi + cr ; zi = air*yr + aii*yi + ci
    arr = g0 * rrr + g2 * rri
    ari = g0 * rri + g2 * rii
    air = g2 * rrr + g1 * rri
    aii = g2 * rri + g1 * rii
    cr = b0 - arr * mr - ari * mi
    ci = b1 - air * mr - aii * mi

    zr = jnp.maximum(arr * yr + ari * yi + cr, 0.0)
    zi = jnp.maximum(air * yr + aii * yi + ci, 0.0)
    return zr, zi


# ----------------------------------------------------------------------------
# Fused kernel: conv1 -> BN1 -> cReLU -> conv2 -> BN2 -> cReLU
# ----------------------------------------------------------------------------
def _conv_bloc_kernel(x_ref, w1_ref, b1_ref, g1_ref, bb1_ref,
                      w2_ref, b2_ref, g2_ref, bb2_ref,
                      or_ref, oi_ref, pad1, pad2, *, width, cout):
    N, H, wcout = or_ref.shape            # wcout = width*cout (lane-folded real half)
    L1 = x_ref.shape[2]                   # 2 * width * Cin
    L2 = 2 * wcout
    M = N * H
    n_samples = M * width                 # BN reduces over (N, H, W)

    # ---- stage 1: halo-only H padding + lane-dense interior copy ----------------
    halo1 = jnp.zeros((N, 1, L1), jnp.float32)
    pad1[:, 0:1, :] = halo1
    pad1[:, H + 1:H + 2, :] = halo1
    pad1[:, 1:H + 1, :] = x_ref[...]      # lane offset 0, fully dense

    # ---- conv1: three banded matmuls (one per kh tap) ---------------------------
    # Band structure of w1 encodes the kw shifts and the W zero padding, so the
    # result is already in the lane-folded [real | imag] output layout.
    y1 = b1_ref[...]                                                     # (1, L2)
    y1 = y1 + jnp.dot(pad1[:, 0:H, :].reshape(M, L1), w1_ref[0],
                      preferred_element_type=jnp.float32)
    y1 = y1 + jnp.dot(pad1[:, 1:H + 1, :].reshape(M, L1), w1_ref[1],
                      preferred_element_type=jnp.float32)
    y1 = y1 + jnp.dot(pad1[:, 2:H + 2, :].reshape(M, L1), w1_ref[2],
                      preferred_element_type=jnp.float32)                # (M, L2)

    zr1, zi1 = _bn_relu_folded(y1[:, :wcout], y1[:, wcout:],
                               g1_ref[...], bb1_ref[...],
                               width=width, cout=cout, n_samples=n_samples)

    # ---- stage 2: intermediate stays in VMEM; halo-only pad + aligned stores ----
    halo2 = jnp.zeros((N, 1, L2), jnp.float32)
    pad2[:, 0:1, :] = halo2
    pad2[:, H + 1:H + 2, :] = halo2
    pad2[:, 1:H + 1, 0:wcout] = zr1.reshape(N, H, wcout)    # lane tile [0, 128)
    pad2[:, 1:H + 1, wcout:] = zi1.reshape(N, H, wcout)     # lane tile [128, 256)

    y2 = b2_ref[...]
    y2 = y2 + jnp.dot(pad2[:, 0:H, :].reshape(M, L2), w2_ref[0],
                      preferred_element_type=jnp.float32)
    y2 = y2 + jnp.dot(pad2[:, 1:H + 1, :].reshape(M, L2), w2_ref[1],
                      preferred_element_type=jnp.float32)
    y2 = y2 + jnp.dot(pad2[:, 2:H + 2, :].reshape(M, L2), w2_ref[2],
                      preferred_element_type=jnp.float32)

    zr2, zi2 = _bn_relu_folded(y2[:, :wcout], y2[:, wcout:],
                               g2_ref[...], bb2_ref[...],
                               width=width, cout=cout, n_samples=n_samples)

    # Lane-dense, 128-aligned output stores (last dim = width*cout = 128 here).
    or_ref[...] = zr2.reshape(N, H, wcout)
    oi_ref[...] = zi2.reshape(N, H, wcout)


# ----------------------------------------------------------------------------
# One-time parameter packing (hoisted out of the per-call path)
# ----------------------------------------------------------------------------
def pack_conv_bloc_params(p, W):
    """Pack PyTorch-layout params into banded/lane-folded slabs for the kernel."""
    def banded(wr_oihw, wi_oihw):
        wr = np.asarray(wr_oihw, np.float32).transpose(2, 3, 1, 0)   # OIHW -> HWIO
        wi = np.asarray(wi_oihw, np.float32).transpose(2, 3, 1, 0)
        KH, KW, Cin, Cout = wr.shape
        out = np.zeros((KH, 2 * W * Cin, 2 * W * Cout), np.float32)
        for kh in range(KH):
            br = np.zeros((W * Cin, W * Cout), np.float32)
            bi = np.zeros((W * Cin, W * Cout), np.float32)
            for wo in range(W):
                for kw in range(KW):
                    w_in = wo + kw - 1                      # W "same" padding via band
                    if 0 <= w_in < W:
                        rs, re = w_in * Cin, (w_in + 1) * Cin
                        cs, ce = wo * Cout, (wo + 1) * Cout
                        br[rs:re, cs:ce] = wr[kh, kw]
                        bi[rs:re, cs:ce] = wi[kh, kw]
            # Complex packing: LHS lanes = [xr | xi], output lanes = [yr | yi]
            #   yr = xr@BR - xi@BI ; yi = xr@BI + xi@BR
            out[kh, :W * Cin, :W * Cout] = br
            out[kh, :W * Cin, W * Cout:] = bi
            out[kh, W * Cin:, :W * Cout] = -bi
            out[kh, W * Cin:, W * Cout:] = br
        return jnp.asarray(out)

    def fold_bias(br, bi):
        br = np.asarray(br, np.float32)
        bi = np.asarray(bi, np.float32)
        row = np.concatenate([np.tile(br - bi, W), np.tile(br + bi, W)])
        return jnp.asarray(row[None, :])                    # (1, 2*W*Cout)

    def tile_lane(v):                                       # (k, Cout) -> (k, W*Cout)
        return jnp.asarray(np.tile(np.asarray(v, np.float32), (1, W)))

    return {
        "w1": banded(p["w1_r"], p["w1_i"]),
        "b1": fold_bias(p["b1_r"], p["b1_i"]),
        "g1": tile_lane(p["bn1_g"]), "bb1": tile_lane(p["bn1_b"]),
        "w2": banded(p["w2_r"], p["w2_i"]),
        "b2": fold_bias(p["b2_r"], p["b2_i"]),
        "g2": tile_lane(p["bn2_g"]), "bb2": tile_lane(p["bn2_b"]),
    }


# ----------------------------------------------------------------------------
# Wrapper: fused pallas_call
# ----------------------------------------------------------------------------
@jax.jit
def conv_bloc_forward(xr, xi, packed):
    """xr/xi: (N, H, W, Cin) f32.  Returns real/imag outputs (N, H, W, Cout)."""
    N, H, W, Cin = xr.shape
    Cout = packed["g1"].shape[1] // W
    WCin, WCout = W * Cin, W * Cout

    # Lane-folded complex input: (N, H, 2*W*Cin), lanes = [real:(w,ci) | imag:(w,ci)]
    x_cat = jnp.concatenate([xr.reshape(N, H, WCin), xi.reshape(N, H, WCin)], axis=-1)

    kernel = functools.partial(_conv_bloc_kernel, width=W, cout=Cout)

    out_r, out_i = pl.pallas_call(
        kernel,
        out_shape=(jax.ShapeDtypeStruct((N, H, WCout), jnp.float32),
                   jax.ShapeDtypeStruct((N, H, WCout), jnp.float32)),
        scratch_shapes=[
            pltpu.VMEM((N, H + 2, 2 * WCin), jnp.float32),    # H-padded input (complex-folded)
            pltpu.VMEM((N, H + 2, 2 * WCout), jnp.float32),   # H-padded intermediate
        ],
        compiler_params=pltpu.CompilerParams(
            vmem_limit_bytes=32 * 1024 * 1024),
    )(x_cat, packed["w1"], packed["b1"], packed["g1"], packed["bb1"],
      packed["w2"], packed["b2"], packed["g2"], packed["bb2"])

    return out_r.reshape(N, H, W, Cout), out_i.reshape(N, H, W, Cout)


# ----------------------------------------------------------------------------
# Pure-JAX reference (for correctness verification)
# ----------------------------------------------------------------------------
def _ref_conv(x, w_hwio, b):
    return lax.conv_general_dilated(
        x, w_hwio, window_strides=(1, 1), padding="SAME",
        dimension_numbers=("NHWC", "HWIO", "NHWC"),
        precision=lax.Precision.HIGHEST) + b


def ref_complex_conv(xr, xi, wr_oihw, wi_oihw, br, bi):
    wr = jnp.transpose(wr_oihw, (2, 3, 1, 0))
    wi = jnp.transpose(wi_oihw, (2, 3, 1, 0))
    yr = _ref_conv(xr, wr, br) - _ref_conv(xi, wi, bi)
    yi = _ref_conv(xi, wr, br) + _ref_conv(xr, wi, bi)
    return yr, yi


def ref_complex_bn_relu(xr, xi, gamma, beta):
    eps = 1e-5
    n = xr.shape[0] * xr.shape[1] * xr.shape[2]
    xr = xr - jnp.mean(xr, axis=(0, 1, 2), keepdims=True)
    xi = xi - jnp.mean(xi, axis=(0, 1, 2), keepdims=True)
    crr = jnp.sum(xr * xr, axis=(0, 1, 2)) / n + eps
    cii = jnp.sum(xi * xi, axis=(0, 1, 2)) / n + eps
    cri = jnp.sum(xr * xi, axis=(0, 1, 2)) / n
    s = jnp.sqrt(crr * cii - cri * cri)
    t = jnp.sqrt(crr + cii + 2.0 * s)
    inv_st = 1.0 / (s * t)
    rrr, rii, rri = (cii + s) * inv_st, (crr + s) * inv_st, -cri * inv_st
    yr = rrr * xr + rri * xi
    yi = rii * xi + rri * xr
    zr = gamma[0] * yr + gamma[2] * yi + beta[0]
    zi = gamma[2] * yr + gamma[1] * yi + beta[1]
    return jnp.maximum(zr, 0.0), jnp.maximum(zi, 0.0)


def ref_forward(xr, xi, p):
    yr, yi = ref_complex_conv(xr, xi, p["w1_r"], p["w1_i"], p["b1_r"], p["b1_i"])
    yr, yi = ref_complex_bn_relu(yr, yi, p["bn1_g"], p["bn1_b"])
    yr, yi = ref_complex_conv(yr, yi, p["w2_r"], p["w2_i"], p["b2_r"], p["b2_i"])
    yr, yi = ref_complex_bn_relu(yr, yi, p["bn2_g"], p["bn2_b"])
    return yr, yi


# ----------------------------------------------------------------------------
if __name__ == "__main__":
    N, Cin, Cout, H, W = 2, 4, 8, 16, 16

    key = jax.random.PRNGKey(0)
    keys = jax.random.split(key, 12)
    scale = 0.1
    params = {
        "w1_r": jax.random.normal(keys[0], (Cout, Cin, 3, 3), jnp.float32) * scale,
        "w1_i": jax.random.normal(keys[1], (Cout, Cin, 3, 3), jnp.float32) * scale,
        "b1_r": jax.random.normal(keys[2], (Cout,), jnp.float32) * scale,
        "b1_i": jax.random.normal(keys[3], (Cout,), jnp.float32) * scale,
        "w2_r": jax.random.normal(keys[4], (Cout, Cout, 3, 3), jnp.float32) * scale,
        "w2_i": jax.random.normal(keys[5], (Cout, Cout, 3, 3), jnp.float32) * scale,
        "b2_r": jax.random.normal(keys[6], (Cout,), jnp.float32) * scale,
        "b2_i": jax.random.normal(keys[7], (Cout,), jnp.float32) * scale,
        "bn1_g": jnp.stack([jnp.full((Cout,), math.sqrt(2.0), jnp.float32),
                            jnp.full((Cout,), math.sqrt(2.0), jnp.float32),
                            jnp.zeros((Cout,), jnp.float32)]),
        "bn1_b": jnp.zeros((2, Cout), jnp.float32),
        "bn2_g": jnp.stack([jnp.full((Cout,), math.sqrt(2.0), jnp.float32),
                            jnp.full((Cout,), math.sqrt(2.0), jnp.float32),
                            jnp.zeros((Cout,), jnp.float32)]),
        "bn2_b": jnp.zeros((2, Cout), jnp.float32),
    }

    # Complex input x (PyTorch view: NCHW complex, shape (2, 4, 16, 16)).
    xr_nchw = jax.random.normal(keys[8], (N, Cin, H, W), jnp.float32)
    xi_nchw = jax.random.normal(keys[9], (N, Cin, H, W), jnp.float32)
    xr = jnp.transpose(xr_nchw, (0, 2, 3, 1))   # -> NHWC
    xi = jnp.transpose(xi_nchw, (0, 2, 3, 1))

    # One-time packing (banded conv slabs + lane-tiled BN params), outside the jit path.
    packed = pack_conv_bloc_params(params, W)

    out_r, out_i = conv_bloc_forward(xr, xi, packed)
    out_r = jax.block_until_ready(out_r)
    out_i = jax.block_until_ready(out_i)

    ref_r, ref_i = ref_forward(xr, xi, params)
    assert np.allclose(np.asarray(out_r), np.asarray(ref_r), atol=1e-3, rtol=1e-3)
    assert np.allclose(np.asarray(out_i), np.asarray(ref_i), atol=1e-3, rtol=1e-3)

    print("KERNEL_OK")
</pallas_src>

<mosaic_0001>
module attributes {stable_mosaic.version = 11 : i64} {
  func.func @_conv_bloc_kernel(%arg0: memref<2x16x128xf32, #tpu.memory_space<vmem>>, %arg1: memref<3x128x256xf32, #tpu.memory_space<vmem>>, %arg2: memref<1x256xf32, #tpu.memory_space<vmem>>, %arg3: memref<3x128xf32, #tpu.memory_space<vmem>>, %arg4: memref<2x128xf32, #tpu.memory_space<vmem>>, %arg5: memref<3x256x256xf32, #tpu.memory_space<vmem>>, %arg6: memref<1x256xf32, #tpu.memory_space<vmem>>, %arg7: memref<3x128xf32, #tpu.memory_space<vmem>>, %arg8: memref<2x128xf32, #tpu.memory_space<vmem>>, %arg9: memref<2x16x128xf32, #tpu.memory_space<vmem>>, %arg10: memref<2x16x128xf32, #tpu.memory_space<vmem>>, %arg11: memref<2x18x128xf32, #tpu.memory_space<vmem>>, %arg12: memref<2x18x256xf32, #tpu.memory_space<vmem>>) attributes {dimension_semantics = [], scalar_prefetch = 0 : i64, scratch_operands = 2 : i64, tpu.core_type = #tpu.core_type<tc>} {
    %cst = arith.constant 0.000000e+00 : f32
    %0 = vector.broadcast %cst : f32 to vector<2x1x128xf32>
    %c0 = arith.constant 0 : index
    %c0_0 = arith.constant 0 : index
    %c0_1 = arith.constant 0 : index
    %1 = vector.load %arg11[%c0, %c0_0, %c0_1] : memref<2x18x128xf32, #tpu.memory_space<vmem>>, vector<2x1x128xf32>
    tpu.vector_store %arg11[%c0, %c0_0, %c0_1], %0 {strides = array<i32>} : memref<2x18x128xf32, #tpu.memory_space<vmem>>, vector<2x1x128xf32>,
    %c0_2 = arith.constant 0 : index
    %c17 = arith.constant 17 : index
    %c0_3 = arith.constant 0 : index
    %2 = vector.load %arg11[%c0_2, %c17, %c0_3] : memref<2x18x128xf32, #tpu.memory_space<vmem>>, vector<2x1x128xf32>
    tpu.vector_store %arg11[%c0_2, %c17, %c0_3], %0 {strides = array<i32>} : memref<2x18x128xf32, #tpu.memory_space<vmem>>, vector<2x1x128xf32>,
    %c0_4 = arith.constant 0 : index
    %c0_5 = arith.constant 0 : index
    %c0_6 = arith.constant 0 : index
    %3 = vector.load %arg0[%c0_4, %c0_5, %c0_6] : memref<2x16x128xf32, #tpu.memory_space<vmem>>, vector<2x16x128xf32>
    %c0_7 = arith.constant 0 : index
    %c1 = arith.constant 1 : index
    %c0_8 = arith.constant 0 : index
    %4 = vector.load %arg11[%c0_7, %c1, %c0_8] : memref<2x18x128xf32, #tpu.memory_space<vmem>>, vector<2x16x128xf32>
    tpu.vector_store %arg11[%c0_7, %c1, %c0_8], %3 {strides = array<i32>} : memref<2x18x128xf32, #tpu.memory_space<vmem>>, vector<2x16x128xf32>,
    %c0_9 = arith.constant 0 : index
    %c0_10 = arith.constant 0 : index
    %5 = vector.load %arg2[%c0_9, %c0_10] : memref<1x256xf32, #tpu.memory_space<vmem>>, vector<1x256xf32>
    %c0_11 = arith.constant 0 : index
    %c0_12 = arith.constant 0 : index
    %c0_13 = arith.constant 0 : index
    %6 = vector.load %arg11[%c0_11, %c0_12, %c0_13] : memref<2x18x128xf32, #tpu.memory_space<vmem>>, vector<2x16x128xf32>
    %7 = vector.shape_cast %6 : vector<2x16x128xf32> to vector<32x128xf32>
    %c0_14 = arith.constant 0 : index
    %c0_15 = arith.constant 0 : index
    %c0_16 = arith.constant 0 : index
    %8 = vector.load %arg1[%c0_14, %c0_15, %c0_16] : memref<3x128x256xf32, #tpu.memory_space<vmem>>, vector<1x128x256xf32>
    %9 = vector.shape_cast %8 : vector<1x128x256xf32> to vector<128x256xf32>
    %cst_17 = arith.constant dense<0.000000e+00> : vector<32x256xf32>
    %10 = tpu.matmul %7, %9, %cst_17 {dimension_numbers = #tpu.dot_dimension_numbers<[1], [0], [0], [1], [0, 0, 1, 1], [], []>} : vector<32x128xf32>, vector<128x256xf32>, vector<32x256xf32> -> vector<32x256xf32>
    %11 = vector.broadcast %5 : vector<1x256xf32> to vector<32x256xf32>
    %12 = arith.addf %11, %10 : vector<32x256xf32>
    %c0_18 = arith.constant 0 : index
    %c1_19 = arith.constant 1 : index
    %c0_20 = arith.constant 0 : index
    %13 = vector.load %arg11[%c0_18, %c1_19, %c0_20] : memref<2x18x128xf32, #tpu.memory_space<vmem>>, vector<2x16x128xf32>
    %14 = vector.shape_cast %13 : vector<2x16x128xf32> to vector<32x128xf32>
    %c1_21 = arith.constant 1 : index
    %c0_22 = arith.constant 0 : index
    %c0_23 = arith.constant 0 : index
    %15 = vector.load %arg1[%c1_21, %c0_22, %c0_23] : memref<3x128x256xf32, #tpu.memory_space<vmem>>, vector<1x128x256xf32>
    %16 = vector.shape_cast %15 : vector<1x128x256xf32> to vector<128x256xf32>
    %cst_24 = arith.constant dense<0.000000e+00> : vector<32x256xf32>
    %17 = tpu.matmul %14, %16, %cst_24 {dimension_numbers = #tpu.dot_dimension_numbers<[1], [0], [0], [1], [0, 0, 1, 1], [], []>} : vector<32x128xf32>, vector<128x256xf32>, vector<32x256xf32> -> vector<32x256xf32>
    %18 = arith.addf %12, %17 : vector<32x256xf32>
    %c0_25 = arith.constant 0 : index
    %c2 = arith.constant 2 : index
    %c0_26 = arith.constant 0 : index
    %19 = vector.load %arg11[%c0_25, %c2, %c0_26] : memref<2x18x128xf32, #tpu.memory_space<vmem>>, vector<2x16x128xf32>
    %20 = vector.shape_cast %19 : vector<2x16x128xf32> to vector<32x128xf32>
    %c2_27 = arith.constant 2 : index
    %c0_28 = arith.constant 0 : index
    %c0_29 = arith.constant 0 : index
    %21 = vector.load %arg1[%c2_27, %c0_28, %c0_29] : memref<3x128x256xf32, #tpu.memory_space<vmem>>, vector<1x128x256xf32>
    %22 = vector.shape_cast %21 : vector<1x128x256xf32> to vector<128x256xf32>
    %cst_30 = arith.constant dense<0.000000e+00> : vector<32x256xf32>
    %23 = tpu.matmul %20, %22, %cst_30 {dimension_numbers = #tpu.dot_dimension_numbers<[1], [0], [0], [1], [0, 0, 1, 1], [], []>} : vector<32x128xf32>, vector<128x256xf32>, vector<32x256xf32> -> vector<32x256xf32>
    %24 = arith.addf %18, %23 : vector<32x256xf32>
    %25 = vector.extract_strided_slice %24 {offsets = [0, 0], sizes = [32, 128], strides = [1, 1]} : vector<32x256xf32> to vector<32x128xf32>
    %26 = vector.extract_strided_slice %24 {offsets = [0, 128], sizes = [32, 128], strides = [1, 1]} : vector<32x256xf32> to vector<32x128xf32>
    %c0_31 = arith.constant 0 : index
    %c0_32 = arith.constant 0 : index
    %27 = vector.load %arg3[%c0_31, %c0_32] : memref<3x128xf32, #tpu.memory_space<vmem>>, vector<3x128xf32>
    %c0_33 = arith.constant 0 : index
    %c0_34 = arith.constant 0 : index
    %28 = vector.load %arg4[%c0_33, %c0_34] : memref<2x128xf32, #tpu.memory_space<vmem>>, vector<2x128xf32>
    %cst_35 = arith.constant dense<0.000000e+00> : vector<128xf32>
    %29 = vector.multi_reduction <add>, %25, %cst_35 [0] : vector<32x128xf32> to vector<128xf32>
    %30 = vector.shape_cast %29 : vector<128xf32> to vector<1x128xf32>
    %c8_i32 = arith.constant 8 : i32
    %31 = tpu.dynamic_rotate %30 by %c8_i32 dim 1 : vector<1x128xf32>, i32 -> vector<1x128xf32>
    %32 = arith.addf %30, %31 : vector<1x128xf32>
    %c16_i32 = arith.constant 16 : i32
    %33 = tpu.dynamic_rotate %32 by %c16_i32 dim 1 : vector<1x128xf32>, i32 -> vector<1x128xf32>
    %34 = arith.addf %32, %33 : vector<1x128xf32>
    %c32_i32 = arith.constant 32 : i32
    %35 = tpu.dynamic_rotate %34 by %c32_i32 dim 1 : vector<1x128xf32>, i32 -> vector<1x128xf32>
    %36 = arith.addf %34, %35 : vector<1x128xf32>
    %c64_i32 = arith.constant 64 : i32
    %37 = tpu.dynamic_rotate %36 by %c64_i32 dim 1 : vector<1x128xf32>, i32 -> vector<1x128xf32>
    %38 = arith.addf %36, %37 : vector<1x128xf32>
    %cst_36 = arith.constant dense<0.000000e+00> : vector<128xf32>
    %39 = vector.multi_reduction <add>, %26, %cst_36 [0] : vector<32x128xf32> to vector<128xf32>
    %40 = vector.shape_cast %39 : vector<128xf32> to vector<1x128xf32>
    %c8_i32_37 = arith.constant 8 : i32
    %41 = tpu.dynamic_rotate %40 by %c8_i32_37 dim 1 : vector<1x128xf32>, i32 -> vector<1x128xf32>
    %42 = arith.addf %40, %41 : vector<1x128xf32>
    %c16_i32_38 = arith.constant 16 : i32
    %43 = tpu.dynamic_rotate %42 by %c16_i32_38 dim 1 : vector<1x128xf32>, i32 -> vector<1x128xf32>
    %44 = arith.addf %42, %43 : vector<1x128xf32>
    %c32_i32_39 = arith.constant 32 : i32
    %45 = tpu.dynamic_rotate %44 by %c32_i32_39 dim 1 : vector<1x128xf32>, i32 -> vector<1x128xf32>
    %46 = arith.addf %44, %45 : vector<1x128xf32>
    %c64_i32_40 = arith.constant 64 : i32
    %47 = tpu.dynamic_rotate %46 by %c64_i32_40 dim 1 : vector<1x128xf32>, i32 -> vector<1x128xf32>
    %48 = arith.addf %46, %47 : vector<1x128xf32>
    %49 = arith.mulf %25, %25 : vector<32x128xf32>
    %cst_41 = arith.constant dense<0.000000e+00> : vector<128xf32>
    %50 = vector.multi_reduction <add>, %49, %cst_41 [0] : vector<32x128xf32> to vector<128xf32>
    %51 = vector.shape_cast %50 : vector<128xf32> to vector<1x128xf32>
    %c8_i32_42 = arith.constant 8 : i32
    %52 = tpu.dynamic_rotate %51 by %c8_i32_42 dim 1 : vector<1x128xf32>, i32 -> vector<1x128xf32>
    %53 = arith.addf %51, %52 : vector<1x128xf32>
    %c16_i32_43 = arith.constant 16 : i32
    %54 = tpu.dynamic_rotate %53 by %c16_i32_43 dim 1 : vector<1x128xf32>, i32 -> vector<1x128xf32>
    %55 = arith.addf %53, %54 : vector<1x128xf32>
    %c32_i32_44 = arith.constant 32 : i32
    %56 = tpu.dynamic_rotate %55 by %c32_i32_44 dim 1 : vector<1x128xf32>, i32 -> vector<1x128xf32>
    %57 = arith.addf %55, %56 : vector<1x128xf32>
    %c64_i32_45 = arith.constant 64 : i32
    %58 = tpu.dynamic_rotate %57 by %c64_i32_45 dim 1 : vector<1x128xf32>, i32 -> vector<1x128xf32>
    %59 = arith.addf %57, %58 : vector<1x128xf32>
    %60 = arith.mulf %26, %26 : vector<32x128xf32>
    %cst_46 = arith.constant dense<0.000000e+00> : vector<128xf32>
    %61 = vector.multi_reduction <add>, %60, %cst_46 [0] : vector<32x128xf32> to vector<128xf32>
    %62 = vector.shape_cast %61 : vector<128xf32> to vector<1x128xf32>
    %c8_i32_47 = arith.constant 8 : i32
    %63 = tpu.dynamic_rotate %62 by %c8_i32_47 dim 1 : vector<1x128xf32>, i32 -> vector<1x128xf32>
    %64 = arith.addf %62, %63 : vector<1x128xf32>
    %c16_i32_48 = arith.constant 16 : i32
    %65 = tpu.dynamic_rotate %64 by %c16_i32_48 dim 1 : vector<1x128xf32>, i32 -> vector<1x128xf32>
    %66 = arith.addf %64, %65 : vector<1x128xf32>
    %c32_i32_49 = arith.constant 32 : i32
    %67 = tpu.dynamic_rotate %66 by %c32_i32_49 dim 1 : vector<1x128xf32>, i32 -> vector<1x128xf32>
    %68 = arith.addf %66, %67 : vector<1x128xf32>
    %c64_i32_50 = arith.constant 64 : i32
    %69 = tpu.dynamic_rotate %68 by %c64_i32_50 dim 1 : vector<1x128xf32>, i32 -> vector<1x128xf32>
    %70 = arith.addf %68, %69 : vector<1x128xf32>
    %71 = arith.mulf %25, %26 : vector<32x128xf32>
    %cst_51 = arith.constant dense<0.000000e+00> : vector<128xf32>
    %72 = vector.multi_reduction <add>, %71, %cst_51 [0] : vector<32x128xf32> to vector<128xf32>
    %73 = vector.shape_cast %72 : vector<128xf32> to vector<1x128xf32>
    %c8_i32_52 = arith.constant 8 : i32
    %74 = tpu.dynamic_rotate %73 by %c8_i32_52 dim 1 : vector<1x128xf32>, i32 -> vector<1x128xf32>
    %75 = arith.addf %73, %74 : vector<1x128xf32>
    %c16_i32_53 = arith.constant 16 : i32
    %76 = tpu.dynamic_rotate %75 by %c16_i32_53 dim 1 : vector<1x128xf32>, i32 -> vector<1x128xf32>
    %77 = arith.addf %75, %76 : vector<1x128xf32>
    %c32_i32_54 = arith.constant 32 : i32
    %78 = tpu.dynamic_rotate %77 by %c32_i32_54 dim 1 : vector<1x128xf32>, i32 -> vector<1x128xf32>
    %79 = arith.addf %77, %78 : vector<1x128xf32>
    %c64_i32_55 = arith.constant 64 : i32
    %80 = tpu.dynamic_rotate %79 by %c64_i32_55 dim 1 : vector<1x128xf32>, i32 -> vector<1x128xf32>
    %81 = arith.addf %79, %80 : vector<1x128xf32>
    %cst_56 = arith.constant 0.001953125 : f32
    %82 = vector.broadcast %cst_56 : f32 to vector<1x128xf32>
    %83 = arith.mulf %38, %82 : vector<1x128xf32>
    %cst_57 = arith.constant 0.001953125 : f32
    %84 = vector.broadcast %cst_57 : f32 to vector<1x128xf32>
    %85 = arith.mulf %48, %84 : vector<1x128xf32>
    %cst_58 = arith.constant 0.001953125 : f32
    %86 = vector.broadcast %cst_58 : f32 to vector<1x128xf32>
    %87 = arith.mulf %59, %86 : vector<1x128xf32>
    %88 = arith.mulf %83, %83 : vector<1x128xf32>
    %89 = arith.subf %87, %88 : vector<1x128xf32>
    %cst_59 = arith.constant 9.99999974E-6 : f32
    %90 = vector.broadcast %cst_59 : f32 to vector<1x128xf32>
    %91 = arith.addf %89, %90 : vector<1x128xf32>
    %cst_60 = arith.constant 0.001953125 : f32
    %92 = vector.broadcast %cst_60 : f32 to vector<1x128xf32>
    %93 = arith.mulf %70, %92 : vector<1x128xf32>
    %94 = arith.mulf %85, %85 : vector<1x128xf32>
    %95 = arith.subf %93, %94 : vector<1x128xf32>
    %cst_61 = arith.constant 9.99999974E-6 : f32
    %96 = vector.broadcast %cst_61 : f32 to vector<1x128xf32>
    %97 = arith.addf %95, %96 : vector<1x128xf32>
    %cst_62 = arith.constant 0.001953125 : f32
    %98 = vector.broadcast %cst_62 : f32 to vector<1x128xf32>
    %99 = arith.mulf %81, %98 : vector<1x128xf32>
    %100 = arith.mulf %83, %85 : vector<1x128xf32>
    %101 = arith.subf %99, %100 : vector<1x128xf32>
    %102 = arith.mulf %91, %97 : vector<1x128xf32>
    %103 = arith.mulf %101, %101 : vector<1x128xf32>
    %104 = arith.subf %102, %103 : vector<1x128xf32>
    %105 = math.sqrt %104 : vector<1x128xf32>
    %106 = arith.addf %91, %97 : vector<1x128xf32>
    %cst_63 = arith.constant 2.000000e+00 : f32
    %107 = vector.broadcast %cst_63 : f32 to vector<1x128xf32>
    %108 = arith.mulf %107, %105 : vector<1x128xf32>
    %109 = arith.addf %106, %108 : vector<1x128xf32>
    %110 = math.sqrt %109 : vector<1x128xf32>
    %111 = arith.mulf %105, %110 : vector<1x128xf32>
    %cst_64 = arith.constant 1.000000e+00 : f32
    %112 = vector.broadcast %cst_64 : f32 to vector<1x128xf32>
    %113 = arith.divf %112, %111 : vector<1x128xf32>
    %114 = arith.addf %97, %105 : vector<1x128xf32>
    %115 = arith.mulf %114, %113 : vector<1x128xf32>
    %116 = arith.addf %91, %105 : vector<1x128xf32>
    %117 = arith.mulf %116, %113 : vector<1x128xf32>
    %cst_65 = arith.constant 0.000000e+00 : f32
    %118 = vector.broadcast %cst_65 : f32 to vector<1x128xf32>
    %119 = arith.subf %118, %101 : vector<1x128xf32>
    %120 = arith.mulf %119, %113 : vector<1x128xf32>
    %121 = vector.extract_strided_slice %27 {offsets = [0, 0], sizes = [1, 128], strides = [1, 1]} : vector<3x128xf32> to vector<1x128xf32>
    %122 = vector.extract_strided_slice %27 {offsets = [1, 0], sizes = [1, 128], strides = [1, 1]} : vector<3x128xf32> to vector<1x128xf32>
    %123 = vector.extract_strided_slice %27 {offsets = [2, 0], sizes = [1, 128], strides = [1, 1]} : vector<3x128xf32> to vector<1x128xf32>
    %124 = vector.extract_strided_slice %28 {offsets = [0, 0], sizes = [1, 128], strides = [1, 1]} : vector<2x128xf32> to vector<1x128xf32>
    %125 = vector.extract_strided_slice %28 {offsets = [1, 0], sizes = [1, 128], strides = [1, 1]} : vector<2x128xf32> to vector<1x128xf32>
    %126 = arith.mulf %121, %115 : vector<1x128xf32>
    %127 = arith.mulf %123, %120 : vector<1x128xf32>
    %128 = arith.addf %126, %127 : vector<1x128xf32>
    %129 = arith.mulf %121, %120 : vector<1x128xf32>
    %130 = arith.mulf %123, %117 : vector<1x128xf32>
    %131 = arith.addf %129, %130 : vector<1x128xf32>
    %132 = arith.mulf %123, %115 : vector<1x128xf32>
    %133 = arith.mulf %122, %120 : vector<1x128xf32>
    %134 = arith.addf %132, %133 : vector<1x128xf32>
    %135 = arith.mulf %123, %120 : vector<1x128xf32>
    %136 = arith.mulf %122, %117 : vector<1x128xf32>
    %137 = arith.addf %135, %136 : vector<1x128xf32>
    %138 = arith.mulf %128, %83 : vector<1x128xf32>
    %139 = arith.subf %124, %138 : vector<1x128xf32>
    %140 = arith.mulf %131, %85 : vector<1x128xf32>
    %141 = arith.subf %139, %140 : vector<1x128xf32>
    %142 = arith.mulf %134, %83 : vector<1x128xf32>
    %143 = arith.subf %125, %142 : vector<1x128xf32>
    %144 = arith.mulf %137, %85 : vector<1x128xf32>
    %145 = arith.subf %143, %144 : vector<1x128xf32>
    %146 = vector.broadcast %128 : vector<1x128xf32> to vector<32x128xf32>
    %147 = arith.mulf %146, %25 : vector<32x128xf32>
    %148 = vector.broadcast %131 : vector<1x128xf32> to vector<32x128xf32>
    %149 = arith.mulf %148, %26 : vector<32x128xf32>
    %150 = arith.addf %147, %149 : vector<32x128xf32>
    %151 = vector.broadcast %141 : vector<1x128xf32> to vector<32x128xf32>
    %152 = arith.addf %150, %151 : vector<32x128xf32>
    %cst_66 = arith.constant 0.000000e+00 : f32
    %153 = vector.broadcast %cst_66 : f32 to vector<32x128xf32>
    %154 = arith.maximumf %152, %153 : vector<32x128xf32>
    %155 = vector.broadcast %134 : vector<1x128xf32> to vector<32x128xf32>
    %156 = arith.mulf %155, %25 : vector<32x128xf32>
    %157 = vector.broadcast %137 : vector<1x128xf32> to vector<32x128xf32>
    %158 = arith.mulf %157, %26 : vector<32x128xf32>
    %159 = arith.addf %156, %158 : vector<32x128xf32>
    %160 = vector.broadcast %145 : vector<1x128xf32> to vector<32x128xf32>
    %161 = arith.addf %159, %160 : vector<32x128xf32>
    %cst_67 = arith.constant 0.000000e+00 : f32
    %162 = vector.broadcast %cst_67 : f32 to vector<32x128xf32>
    %163 = arith.maximumf %161, %162 : vector<32x128xf32>
    %cst_68 = arith.constant 0.000000e+00 : f32
    %164 = vector.broadcast %cst_68 : f32 to vector<2x1x256xf32>
    %c0_69 = arith.constant 0 : index
    %c0_70 = arith.constant 0 : index
    %c0_71 = arith.constant 0 : index
    %165 = vector.load %arg12[%c0_69, %c0_70, %c0_71] : memref<2x18x256xf32, #tpu.memory_space<vmem>>, vector<2x1x256xf32>
    tpu.vector_store %arg12[%c0_69, %c0_70, %c0_71], %164 {strides = array<i32>} : memref<2x18x256xf32, #tpu.memory_space<vmem>>, vector<2x1x256xf32>,
    %c0_72 = arith.constant 0 : index
    %c17_73 = arith.constant 17 : index
    %c0_74 = arith.constant 0 : index
    %166 = vector.load %arg12[%c0_72, %c17_73, %c0_74] : memref<2x18x256xf32, #tpu.memory_space<vmem>>, vector<2x1x256xf32>
    tpu.vector_store %arg12[%c0_72, %c17_73, %c0_74], %164 {strides = array<i32>} : memref<2x18x256xf32, #tpu.memory_space<vmem>>, vector<2x1x256xf32>,
    %167 = vector.shape_cast %154 : vector<32x128xf32> to vector<2x16x128xf32>
    %c0_75 = arith.constant 0 : index
    %c1_76 = arith.constant 1 : index
    %c0_77 = arith.constant 0 : index
    %168 = vector.load %arg12[%c0_75, %c1_76, %c0_77] : memref<2x18x256xf32, #tpu.memory_space<vmem>>, vector<2x16x128xf32>
    tpu.vector_store %arg12[%c0_75, %c1_76, %c0_77], %167 {strides = array<i32>} : memref<2x18x256xf32, #tpu.memory_space<vmem>>, vector<2x16x128xf32>,
    %169 = vector.shape_cast %163 : vector<32x128xf32> to vector<2x16x128xf32>
    %c0_78 = arith.constant 0 : index
    %c1_79 = arith.constant 1 : index
    %c128 = arith.constant 128 : index
    %170 = vector.load %arg12[%c0_78, %c1_79, %c128] : memref<2x18x256xf32, #tpu.memory_space<vmem>>, vector<2x16x128xf32>
    tpu.vector_store %arg12[%c0_78, %c1_79, %c128], %169 {strides = array<i32>} : memref<2x18x256xf32, #tpu.memory_space<vmem>>, vector<2x16x128xf32>,
    %c0_80 = arith.constant 0 : index
    %c0_81 = arith.constant 0 : index
    %171 = vector.load %arg6[%c0_80, %c0_81] : memref<1x256xf32, #tpu.memory_space<vmem>>, vector<1x256xf32>
    %c0_82 = arith.constant 0 : index
    %c0_83 = arith.constant 0 : index
    %c0_84 = arith.constant 0 : index
    %172 = vector.load %arg12[%c0_82, %c0_83, %c0_84] : memref<2x18x256xf32, #tpu.memory_space<vmem>>, vector<2x16x256xf32>
    %173 = vector.shape_cast %172 : vector<2x16x256xf32> to vector<32x256xf32>
    %c0_85 = arith.constant 0 : index
    %c0_86 = arith.constant 0 : index
    %c0_87 = arith.constant 0 : index
    %174 = vector.load %arg5[%c0_85, %c0_86, %c0_87] : memref<3x256x256xf32, #tpu.memory_space<vmem>>, vector<1x256x256xf32>
    %175 = vector.shape_cast %174 : vector<1x256x256xf32> to vector<256x256xf32>
    %cst_88 = arith.constant dense<0.000000e+00> : vector<32x256xf32>
    %176 = tpu.matmul %173, %175, %cst_88 {dimension_numbers = #tpu.dot_dimension_numbers<[1], [0], [0], [1], [0, 0, 1, 1], [], []>} : vector<32x256xf32>, vector<256x256xf32>, vector<32x256xf32> -> vector<32x256xf32>
    %177 = vector.broadcast %171 : vector<1x256xf32> to vector<32x256xf32>
    %178 = arith.addf %177, %176 : vector<32x256xf32>
    %c0_89 = arith.constant 0 : index
    %c1_90 = arith.constant 1 : index
    %c0_91 = arith.constant 0 : index
    %179 = vector.load %arg12[%c0_89, %c1_90, %c0_91] : memref<2x18x256xf32, #tpu.memory_space<vmem>>, vector<2x16x256xf32>
    %180 = vector.shape_cast %179 : vector<2x16x256xf32> to vector<32x256xf32>
    %c1_92 = arith.constant 1 : index
    %c0_93 = arith.constant 0 : index
    %c0_94 = arith.constant 0 : index
    %181 = vector.load %arg5[%c1_92, %c0_93, %c0_94] : memref<3x256x256xf32, #tpu.memory_space<vmem>>, vector<1x256x256xf32>
    %182 = vector.shape_cast %181 : vector<1x256x256xf32> to vector<256x256xf32>
    %cst_95 = arith.constant dense<0.000000e+00> : vector<32x256xf32>
    %183 = tpu.matmul %180, %182, %cst_95 {dimension_numbers = #tpu.dot_dimension_numbers<[1], [0], [0], [1], [0, 0, 1, 1], [], []>} : vector<32x256xf32>, vector<256x256xf32>, vector<32x256xf32> -> vector<32x256xf32>
    %184 = arith.addf %178, %183 : vector<32x256xf32>
    %c0_96 = arith.constant 0 : index
    %c2_97 = arith.constant 2 : index
    %c0_98 = arith.constant 0 : index
    %185 = vector.load %arg12[%c0_96, %c2_97, %c0_98] : memref<2x18x256xf32, #tpu.memory_space<vmem>>, vector<2x16x256xf32>
    %186 = vector.shape_cast %185 : vector<2x16x256xf32> to vector<32x256xf32>
    %c2_99 = arith.constant 2 : index
    %c0_100 = arith.constant 0 : index
    %c0_101 = arith.constant 0 : index
    %187 = vector.load %arg5[%c2_99, %c0_100, %c0_101] : memref<3x256x256xf32, #tpu.memory_space<vmem>>, vector<1x256x256xf32>
    %188 = vector.shape_cast %187 : vector<1x256x256xf32> to vector<256x256xf32>
    %cst_102 = arith.constant dense<0.000000e+00> : vector<32x256xf32>
    %189 = tpu.matmul %186, %188, %cst_102 {dimension_numbers = #tpu.dot_dimension_numbers<[1], [0], [0], [1], [0, 0, 1, 1], [], []>} : vector<32x256xf32>, vector<256x256xf32>, vector<32x256xf32> -> vector<32x256xf32>
    %190 = arith.addf %184, %189 : vector<32x256xf32>
    %191 = vector.extract_strided_slice %190 {offsets = [0, 0], sizes = [32, 128], strides = [1, 1]} : vector<32x256xf32> to vector<32x128xf32>
    %192 = vector.extract_strided_slice %190 {offsets = [0, 128], sizes = [32, 128], strides = [1, 1]} : vector<32x256xf32> to vector<32x128xf32>
    %c0_103 = arith.constant 0 : index
    %c0_104 = arith.constant 0 : index
    %193 = vector.load %arg7[%c0_103, %c0_104] : memref<3x128xf32, #tpu.memory_space<vmem>>, vector<3x128xf32>
    %c0_105 = arith.constant 0 : index
    %c0_106 = arith.constant 0 : index
    %194 = vector.load %arg8[%c0_105, %c0_106] : memref<2x128xf32, #tpu.memory_space<vmem>>, vector<2x128xf32>
    %cst_107 = arith.constant dense<0.000000e+00> : vector<128xf32>
    %195 = vector.multi_reduction <add>, %191, %cst_107 [0] : vector<32x128xf32> to vector<128xf32>
    %196 = vector.shape_cast %195 : vector<128xf32> to vector<1x128xf32>
    %c8_i32_108 = arith.constant 8 : i32
    %197 = tpu.dynamic_rotate %196 by %c8_i32_108 dim 1 : vector<1x128xf32>, i32 -> vector<1x128xf32>
    %198 = arith.addf %196, %197 : vector<1x128xf32>
    %c16_i32_109 = arith.constant 16 : i32
    %199 = tpu.dynamic_rotate %198 by %c16_i32_109 dim 1 : vector<1x128xf32>, i32 -> vector<1x128xf32>
    %200 = arith.addf %198, %199 : vector<1x128xf32>
    %c32_i32_110 = arith.constant 32 : i32
    %201 = tpu.dynamic_rotate %200 by %c32_i32_110 dim 1 : vector<1x128xf32>, i32 -> vector<1x128xf32>
    %202 = arith.addf %200, %201 : vector<1x128xf32>
    %c64_i32_111 = arith.constant 64 : i32
    %203 = tpu.dynamic_rotate %202 by %c64_i32_111 dim 1 : vector<1x128xf32>, i32 -> vector<1x128xf32>
    %204 = arith.addf %202, %203 : vector<1x128xf32>
    %cst_112 = arith.constant dense<0.000000e+00> : vector<128xf32>
    %205 = vector.multi_reduction <add>, %192, %cst_112 [0] : vector<32x128xf32> to vector<128xf32>
    %206 = vector.shape_cast %205 : vector<128xf32> to vector<1x128xf32>
    %c8_i32_113 = arith.constant 8 : i32
    %207 = tpu.dynamic_rotate %206 by %c8_i32_113 dim 1 : vector<1x128xf32>, i32 -> vector<1x128xf32>
    %208 = arith.addf %206, %207 : vector<1x128xf32>
    %c16_i32_114 = arith.constant 16 : i32
    %209 = tpu.dynamic_rotate %208 by %c16_i32_114 dim 1 : vector<1x128xf32>, i32 -> vector<1x128xf32>
    %210 = arith.addf %208, %209 : vector<1x128xf32>
    %c32_i32_115 = arith.constant 32 : i32
    %211 = tpu.dynamic_rotate %210 by %c32_i32_115 dim 1 : vector<1x128xf32>, i32 -> vector<1x128xf32>
    %212 = arith.addf %210, %211 : vector<1x128xf32>
    %c64_i32_116 = arith.constant 64 : i32
    %213 = tpu.dynamic_rotate %212 by %c64_i32_116 dim 1 : vector<1x128xf32>, i32 -> vector<1x128xf32>
    %214 = arith.addf %212, %213 : vector<1x128xf32>
    %215 = arith.mulf %191, %191 : vector<32x128xf32>
    %cst_117 = arith.constant dense<0.000000e+00> : vector<128xf32>
    %216 = vector.multi_reduction <add>, %215, %cst_117 [0] : vector<32x128xf32> to vector<128xf32>
    %217 = vector.shape_cast %216 : vector<128xf32> to vector<1x128xf32>
    %c8_i32_118 = arith.constant 8 : i32
    %218 = tpu.dynamic_rotate %217 by %c8_i32_118 dim 1 : vector<1x128xf32>, i32 -> vector<1x128xf32>
    %219 = arith.addf %217, %218 : vector<1x128xf32>
    %c16_i32_119 = arith.constant 16 : i32
    %220 = tpu.dynamic_rotate %219 by %c16_i32_119 dim 1 : vector<1x128xf32>, i32 -> vector<1x128xf32>
    %221 = arith.addf %219, %220 : vector<1x128xf32>
    %c32_i32_120 = arith.constant 32 : i32
    %222 = tpu.dynamic_rotate %221 by %c32_i32_120 dim 1 : vector<1x128xf32>, i32 -> vector<1x128xf32>
    %223 = arith.addf %221, %222 : vector<1x128xf32>
    %c64_i32_121 = arith.constant 64 : i32
    %224 = tpu.dynamic_rotate %223 by %c64_i32_121 dim 1 : vector<1x128xf32>, i32 -> vector<1x128xf32>
    %225 = arith.addf %223, %224 : vector<1x128xf32>
    %226 = arith.mulf %192, %192 : vector<32x128xf32>
    %cst_122 = arith.constant dense<0.000000e+00> : vector<128xf32>
    %227 = vector.multi_reduction <add>, %226, %cst_122 [0] : vector<32x128xf32> to vector<128xf32>
    %228 = vector.shape_cast %227 : vector<128xf32> to vector<1x128xf32>
    %c8_i32_123 = arith.constant 8 : i32
    %229 = tpu.dynamic_rotate %228 by %c8_i32_123 dim 1 : vector<1x128xf32>, i32 -> vector<1x128xf32>
    %230 = arith.addf %228, %229 : vector<1x128xf32>
    %c16_i32_124 = arith.constant 16 : i32
    %231 = tpu.dynamic_rotate %230 by %c16_i32_124 dim 1 : vector<1x128xf32>, i32 -> vector<1x128xf32>
    %232 = arith.addf %230, %231 : vector<1x128xf32>
    %c32_i32_125 = arith.constant 32 : i32
    %233 = tpu.dynamic_rotate %232 by %c32_i32_125 dim 1 : vector<1x128xf32>, i32 -> vector<1x128xf32>
    %234 = arith.addf %232, %233 : vector<1x128xf32>
    %c64_i32_126 = arith.constant 64 : i32
    %235 = tpu.dynamic_rotate %234 by %c64_i32_126 dim 1 : vector<1x128xf32>, i32 -> vector<1x128xf32>
    %236 = arith.addf %234, %235 : vector<1x128xf32>
    %237 = arith.mulf %191, %192 : vector<32x128xf32>
    %cst_127 = arith.constant dense<0.000000e+00> : vector<128xf32>
    %238 = vector.multi_reduction <add>, %237, %cst_127 [0] : vector<32x128xf32> to vector<128xf32>
    %239 = vector.shape_cast %238 : vector<128xf32> to vector<1x128xf32>
    %c8_i32_128 = arith.constant 8 : i32
    %240 = tpu.dynamic_rotate %239 by %c8_i32_128 dim 1 : vector<1x128xf32>, i32 -> vector<1x128xf32>
    %241 = arith.addf %239, %240 : vector<1x128xf32>
    %c16_i32_129 = arith.constant 16 : i32
    %242 = tpu.dynamic_rotate %241 by %c16_i32_129 dim 1 : vector<1x128xf32>, i32 -> vector<1x128xf32>
    %243 = arith.addf %241, %242 : vector<1x128xf32>
    %c32_i32_130 = arith.constant 32 : i32
    %244 = tpu.dynamic_rotate %243 by %c32_i32_130 dim 1 : vector<1x128xf32>, i32 -> vector<1x128xf32>
    %245 = arith.addf %243, %244 : vector<1x128xf32>
    %c64_i32_131 = arith.constant 64 : i32
    %246 = tpu.dynamic_rotate %245 by %c64_i32_131 dim 1 : vector<1x128xf32>, i32 -> vector<1x128xf32>
    %247 = arith.addf %245, %246 : vector<1x128xf32>
    %cst_132 = arith.constant 0.001953125 : f32
    %248 = vector.broadcast %cst_132 : f32 to vector<1x128xf32>
    %249 = arith.mulf %204, %248 : vector<1x128xf32>
    %cst_133 = arith.constant 0.001953125 : f32
    %250 = vector.broadcast %cst_133 : f32 to vector<1x128xf32>
    %251 = arith.mulf %214, %250 : vector<1x128xf32>
    %cst_134 = arith.constant 0.001953125 : f32
    %252 = vector.broadcast %cst_134 : f32 to vector<1x128xf32>
    %253 = arith.mulf %225, %252 : vector<1x128xf32>
    %254 = arith.mulf %249, %249 : vector<1x128xf32>
    %255 = arith.subf %253, %254 : vector<1x128xf32>
    %cst_135 = arith.constant 9.99999974E-6 : f32
    %256 = vector.broadcast %cst_135 : f32 to vector<1x128xf32>
    %257 = arith.addf %255, %256 : vector<1x128xf32>
    %cst_136 = arith.constant 0.001953125 : f32
    %258 = vector.broadcast %cst_136 : f32 to vector<1x128xf32>
    %259 = arith.mulf %236, %258 : vector<1x128xf32>
    %260 = arith.mulf %251, %251 : vector<1x128xf32>
    %261 = arith.subf %259, %260 : vector<1x128xf32>
    %cst_137 = arith.constant 9.99999974E-6 : f32
    %262 = vector.broadcast %cst_137 : f32 to vector<1x128xf32>
    %263 = arith.addf %261, %262 : vector<1x128xf32>
    %cst_138 = arith.constant 0.001953125 : f32
    %264 = vector.broadcast %cst_138 : f32 to vector<1x128xf32>
    %265 = arith.mulf %247, %264 : vector<1x128xf32>
    %266 = arith.mulf %249, %251 : vector<1x128xf32>
    %267 = arith.subf %265, %266 : vector<1x128xf32>
    %268 = arith.mulf %257, %263 : vector<1x128xf32>
    %269 = arith.mulf %267, %267 : vector<1x128xf32>
    %270 = arith.subf %268, %269 : vector<1x128xf32>
    %271 = math.sqrt %270 : vector<1x128xf32>
    %272 = arith.addf %257, %263 : vector<1x128xf32>
    %cst_139 = arith.constant 2.000000e+00 : f32
    %273 = vector.broadcast %cst_139 : f32 to vector<1x128xf32>
    %274 = arith.mulf %273, %271 : vector<1x128xf32>
    %275 = arith.addf %272, %274 : vector<1x128xf32>
    %276 = math.sqrt %275 : vector<1x128xf32>
    %277 = arith.mulf %271, %276 : vector<1x128xf32>
    %cst_140 = arith.constant 1.000000e+00 : f32
    %278 = vector.broadcast %cst_140 : f32 to vector<1x128xf32>
    %279 = arith.divf %278, %277 : vector<1x128xf32>
    %280 = arith.addf %263, %271 : vector<1x128xf32>
    %281 = arith.mulf %280, %279 : vector<1x128xf32>
    %282 = arith.addf %257, %271 : vector<1x128xf32>
    %283 = arith.mulf %282, %279 : vector<1x128xf32>
    %cst_141 = arith.constant 0.000000e+00 : f32
    %284 = vector.broadcast %cst_141 : f32 to vector<1x128xf32>
    %285 = arith.subf %284, %267 : vector<1x128xf32>
    %286 = arith.mulf %285, %279 : vector<1x128xf32>
    %287 = vector.extract_strided_slice %193 {offsets = [0, 0], sizes = [1, 128], strides = [1, 1]} : vector<3x128xf32> to vector<1x128xf32>
    %288 = vector.extract_strided_slice %193 {offsets = [1, 0], sizes = [1, 128], strides = [1, 1]} : vector<3x128xf32> to vector<1x128xf32>
    %289 = vector.extract_strided_slice %193 {offsets = [2, 0], sizes = [1, 128], strides = [1, 1]} : vector<3x128xf32> to vector<1x128xf32>
    %290 = vector.extract_strided_slice %194 {offsets = [0, 0], sizes = [1, 128], strides = [1, 1]} : vector<2x128xf32> to vector<1x128xf32>
    %291 = vector.extract_strided_slice %194 {offsets = [1, 0], sizes = [1, 128], strides = [1, 1]} : vector<2x128xf32> to vector<1x128xf32>
    %292 = arith.mulf %287, %281 : vector<1x128xf32>
    %293 = arith.mulf %289, %286 : vector<1x128xf32>
    %294 = arith.addf %292, %293 : vector<1x128xf32>
    %295 = arith.mulf %287, %286 : vector<1x128xf32>
    %296 = arith.mulf %289, %283 : vector<1x128xf32>
    %297 = arith.addf %295, %296 : vector<1x128xf32>
    %298 = arith.mulf %289, %281 : vector<1x128xf32>
    %299 = arith.mulf %288, %286 : vector<1x128xf32>
    %300 = arith.addf %298, %299 : vector<1x128xf32>
    %301 = arith.mulf %289, %286 : vector<1x128xf32>
    %302 = arith.mulf %288, %283 : vector<1x128xf32>
    %303 = arith.addf %301, %302 : vector<1x128xf32>
    %304 = arith.mulf %294, %249 : vector<1x128xf32>
    %305 = arith.subf %290, %304 : vector<1x128xf32>
    %306 = arith.mulf %297, %251 : vector<1x128xf32>
    %307 = arith.subf %305, %306 : vector<1x128xf32>
    %308 = arith.mulf %300, %249 : vector<1x128xf32>
    %309 = arith.subf %291, %308 : vector<1x128xf32>
    %310 = arith.mulf %303, %251 : vector<1x128xf32>
    %311 = arith.subf %309, %310 : vector<1x128xf32>
    %312 = vector.broadcast %294 : vector<1x128xf32> to vector<32x128xf32>
    %313 = arith.mulf %312, %191 : vector<32x128xf32>
    %314 = vector.broadcast %297 : vector<1x128xf32> to vector<32x128xf32>
    %315 = arith.mulf %314, %192 : vector<32x128xf32>
    %316 = arith.addf %313, %315 : vector<32x128xf32>
    %317 = vector.broadcast %307 : vector<1x128xf32> to vector<32x128xf32>
    %318 = arith.addf %316, %317 : vector<32x128xf32>
    %cst_142 = arith.constant 0.000000e+00 : f32
    %319 = vector.broadcast %cst_142 : f32 to vector<32x128xf32>
    %320 = arith.maximumf %318, %319 : vector<32x128xf32>
    %321 = vector.broadcast %300 : vector<1x128xf32> to vector<32x128xf32>
    %322 = arith.mulf %321, %191 : vector<32x128xf32>
    %323 = vector.broadcast %303 : vector<1x128xf32> to vector<32x128xf32>
    %324 = arith.mulf %323, %192 : vector<32x128xf32>
    %325 = arith.addf %322, %324 : vector<32x128xf32>
    %326 = vector.broadcast %311 : vector<1x128xf32> to vector<32x128xf32>
    %327 = arith.addf %325, %326 : vector<32x128xf32>
    %cst_143 = arith.constant 0.000000e+00 : f32
    %328 = vector.broadcast %cst_143 : f32 to vector<32x128xf32>
    %329 = arith.maximumf %327, %328 : vector<32x128xf32>
    %330 = vector.shape_cast %320 : vector<32x128xf32> to vector<2x16x128xf32>
    %c0_144 = arith.constant 0 : index
    %c0_145 = arith.constant 0 : index
    %c0_146 = arith.constant 0 : index
    %331 = vector.load %arg9[%c0_144, %c0_145, %c0_146] : memref<2x16x128xf32, #tpu.memory_space<vmem>>, vector<2x16x128xf32>
    tpu.vector_store %arg9[%c0_144, %c0_145, %c0_146], %330 {strides = array<i32>} : memref<2x16x128xf32, #tpu.memory_space<vmem>>, vector<2x16x128xf32>,
    %332 = vector.shape_cast %329 : vector<32x128xf32> to vector<2x16x128xf32>
    %c0_147 = arith.constant 0 : index
    %c0_148 = arith.constant 0 : index
    %c0_149 = arith.constant 0 : index
    %333 = vector.load %arg10[%c0_147, %c0_148, %c0_149] : memref<2x16x128xf32, #tpu.memory_space<vmem>>, vector<2x16x128xf32>
    tpu.vector_store %arg10[%c0_147, %c0_148, %c0_149], %332 {strides = array<i32>} : memref<2x16x128xf32, #tpu.memory_space<vmem>>, vector<2x16x128xf32>,
    return
  }
}

</mosaic_0001>

<llo_original>
// kernel: conv_bloc_forward.1
$region0: #{conv_bloc_forward.1}
  #allocation0 [shape = 'u32[]', space=smem, size = 0x4, offset = 0x4, fixed_abs, tag = 'smem constant byte address 0x4 - core index']
  #allocation1 [shape = 'u32[72,128]{1,0:T(1,128)}', space=vmem, size = 0x9000, scoped, tag = 'internal scratch']
  #allocation2 [shape = 'f32[2,18,128]{2,1,0:T(8,128)}', space=vmem, size = 0x6000, scoped, tag = 'scratch operand']
  #allocation3 [shape = 'f32[2,18,256]{2,1,0:T(8,128)}', space=vmem, size = 0xc000, scoped, tag = 'scratch operand']
  %s0 = inlined_call_operand.vmem [shape: f32[2,16,128], index: 0, kind: input, shape index: {}]
  %s1 = inlined_call_operand.hbm [shape: f32[3,128,256], index: 1, kind: input, shape index: {}]
  %s2 = inlined_call_operand.vmem [shape: f32[1,256], index: 2, kind: input, shape index: {}]
  %s3 = inlined_call_operand.vmem [shape: f32[3,128], index: 3, kind: input, shape index: {}]
  %s4 = inlined_call_operand.vmem [shape: f32[2,128], index: 4, kind: input, shape index: {}]
  %s5 = inlined_call_operand.hbm [shape: f32[3,256,256], index: 5, kind: input, shape index: {}]
  %s6 = inlined_call_operand.vmem [shape: f32[1,256], index: 6, kind: input, shape index: {}]
  %s7 = inlined_call_operand.vmem [shape: f32[3,128], index: 7, kind: input, shape index: {}]
  %s8 = inlined_call_operand.vmem [shape: f32[2,128], index: 8, kind: input, shape index: {}]
  %s9 = inlined_call_operand.vmem [shape: f32[2,16,128], index: 9, kind: output, shape index: {0}]
  %s10 = inlined_call_operand.vmem [shape: f32[2,16,128], index: 10, kind: output, shape index: {1}]
  %11 = xla_tuple %s9, %s10
  %s12 = sld [smem:[#allocation0]]
  $region62: #{conv_bloc_forward.1} parent=0
    _
  %s14 = ssub.s32 1, %s12
  %s15 = scalar_select 0, %s14, %s12
  $region1: #{conv_bloc_forward.1} parent=0
    #allocation4 [shape = 'u8[393216]{0}', space=vmem, size = 0x60000, scoped, tag = 'input window, operand 1, single buffered']
    #allocation5 [shape = 's32[1]{0}', space=sflag, size = 0x4, scoped, tag = 'scoped memory for conv_bloc_forward.1']
    #allocation6 [shape = 'u8[786432]{0}', space=vmem, size = 0xc0000, scoped, tag = 'input window, operand 5, single buffered']
    #allocation7 [shape = 's32[1]{0}', space=sflag, size = 0x4, scoped, tag = 'scoped memory for conv_bloc_forward.1']
    %16 = vsyncpa [#allocation5], 0
    %17 = vsyncpa [#allocation7], 0
    // Predicated region
    $region2: #{conv_bloc_forward.1} parent=1 // pred_check
      _
    $region3: #{conv_bloc_forward.1} parent=1 // pred_check_branch
      %19 = sbr.rel (0) target = $region5
    $region4: #{conv_bloc_forward.1} parent=1 // pred_region
      _
    $region5: #{conv_bloc_forward.1} parent=1 // pred_fallthru
      _
    // Predicated region
    $region6: #{conv_bloc_forward.1} parent=1 // pred_check
      _
    $region7: #{conv_bloc_forward.1} parent=1 // pred_check_branch
      %21 = sbr.rel (0) target = $region9
    $region8: #{conv_bloc_forward.1} parent=1 // pred_region
      %23 = vsyncadd [#allocation5], 0
      %s24 = sshll.u32 %s1, 4
      %s25 = int_to_ptr.hbm [resolvable:$true] %s24
      %s26 = sshll.u32 [#allocation4], 4
      %s27 = int_to_ptr.vmem [resolvable:$true] %s26
      %32 = dma.hbm_to_vmem [thread:$0]  %s25, 12288, %s27, [#allocation5], 256, 256, 16
    $region9: #{conv_bloc_forward.1} parent=1 // pred_fallthru
      _
    // Predicated region
    $region10: #{conv_bloc_forward.1} parent=1 // pred_check
      _
    $region11: #{conv_bloc_forward.1} parent=1 // pred_check_branch
      %34 = sbr.rel (0) target = $region13
    $region12: #{conv_bloc_forward.1} parent=1 // pred_region
      _
    $region13: #{conv_bloc_forward.1} parent=1 // pred_fallthru
      _
    // Predicated region
    $region14: #{conv_bloc_forward.1} parent=1 // pred_check
      _
    $region15: #{conv_bloc_forward.1} parent=1 // pred_check_branch
      %36 = sbr.rel (0) target = $region17
    $region16: #{conv_bloc_forward.1} parent=1 // pred_region
      _
    $region17: #{conv_bloc_forward.1} parent=1 // pred_fallthru
      _
    // Predicated region
    $region18: #{conv_bloc_forward.1} parent=1 // pred_check
      _
    $region19: #{conv_bloc_forward.1} parent=1 // pred_check_branch
      %38 = sbr.rel (0) target = $region21
    $region20: #{conv_bloc_forward.1} parent=1 // pred_region
      _
    $region21: #{conv_bloc_forward.1} parent=1 // pred_fallthru
      _
    // Predicated region
    $region22: #{conv_bloc_forward.1} parent=1 // pred_check
      _
    $region23: #{conv_bloc_forward.1} parent=1 // pred_check_branch
      %40 = sbr.rel (0) target = $region25
    $region24: #{conv_bloc_forward.1} parent=1 // pred_region
      %42 = vsyncadd [#allocation7], 0
      %s43 = sshll.u32 %s5, 4
      %s44 = int_to_ptr.hbm [resolvable:$true] %s43
      %s45 = sshll.u32 [#allocation6], 4
      %s46 = int_to_ptr.vmem [resolvable:$true] %s45
      %51 = dma.hbm_to_vmem [thread:$0]  %s44, 24576, %s46, [#allocation7], 256, 256, 16
    $region25: #{conv_bloc_forward.1} parent=1 // pred_fallthru
      _
    // Predicated region
    $region26: #{conv_bloc_forward.1} parent=1 // pred_check
      _
    $region27: #{conv_bloc_forward.1} parent=1 // pred_check_branch
      %53 = sbr.rel (0) target = $region29
    $region28: #{conv_bloc_forward.1} parent=1 // pred_region
      _
    $region29: #{conv_bloc_forward.1} parent=1 // pred_fallthru
      _
    // Predicated region
    $region30: #{conv_bloc_forward.1} parent=1 // pred_check
      _
    $region31: #{conv_bloc_forward.1} parent=1 // pred_check_branch
      %55 = sbr.rel (0) target = $region33
    $region32: #{conv_bloc_forward.1} parent=1 // pred_region
      _
    $region33: #{conv_bloc_forward.1} parent=1 // pred_fallthru
      _
    // Predicated region
    $region34: #{conv_bloc_forward.1} parent=1 // pred_check
      _
    $region35: #{conv_bloc_forward.1} parent=1 // pred_check_branch
      %57 = sbr.rel (0) target = $region37
    $region36: #{conv_bloc_forward.1} parent=1 // pred_region
      _
    $region37: #{conv_bloc_forward.1} parent=1 // pred_fallthru
      _
    // Predicated region
    $region38: #{conv_bloc_forward.1} parent=1 // pred_check
      _
    $region39: #{conv_bloc_forward.1} parent=1 // pred_check_branch
      %59 = sbr.rel (0) target = $region41
    $region40: #{conv_bloc_forward.1} parent=1 // pred_region
      %61 = dma.done [#allocation5], 12288
    $region41: #{conv_bloc_forward.1} parent=1 // pred_fallthru
      _
    // Predicated region
    $region42: #{conv_bloc_forward.1} parent=1 // pred_check
      _
    $region43: #{conv_bloc_forward.1} parent=1 // pred_check_branch
      %63 = sbr.rel (0) target = $region45
    $region44: #{conv_bloc_forward.1} parent=1 // pred_region
      %65 = dma.done [#allocation7], 24576
    $region45: #{conv_bloc_forward.1} parent=1 // pred_fallthru
      _
    %66 = vst [vmem:[#allocation2] sm:$0x1] 0.0
    %67 = vst [vmem:[#allocation2 + $0x18] sm:$0x1] 0.0
    %68 = vst [vmem:[#allocation2 + $0x11] sm:$0x1] 0.0
    %69 = vst [vmem:[#allocation2 + $0x29] sm:$0x1] 0.0
    %v70 = vld [vmem:[%s0] sm:$0xff]
    %v71 = vld [vmem:[%s0 + $0x8] sm:$0xff]
    %v72 = vld [vmem:[%s0 + $0x10] sm:$0xff]
    %v73 = vld [vmem:[%s0 + $0x18] sm:$0xff]
    %74 = vst [vmem:[#allocation2 + $0x1] sm:$0xff] %v70
    %75 = vst [vmem:[#allocation2 + $0x9] sm:$0xff] %v71
    %76 = vst [vmem:[#allocation2 + $0x19] sm:$0xff] %v72
    %77 = vst [vmem:[#allocation2 + $0x21] sm:$0xff] %v73
    %v78 = vld [vmem:[%s2] sm:$0x3]
    %v79 = vld [vmem:[#allocation2] sm:$0xff]
    %v80 = vld [vmem:[#allocation2 + $0x8] sm:$0xff]
    %v81 = vld [vmem:[#allocation2 + $0x18] sm:$0xff]
    %v82 = vld [vmem:[#allocation2 + $0x20] sm:$0xff]
    %v83 = vld [vmem:[#allocation4] sm:$0xff]
    %v84 = vld [vmem:[#allocation4 + $0x8] sm:$0xff]
    %v85 = vld [vmem:[#allocation4 + $0x10] sm:$0xff]
    %v86 = vld [vmem:[#allocation4 + $0x18] sm:$0xff]
    %v87 = vld [vmem:[#allocation4 + $0x20] sm:$0xff]
    %v88 = vld [vmem:[#allocation4 + $0x28] sm:$0xff]
    %v89 = vld [vmem:[#allocation4 + $0x30] sm:$0xff]
    %v90 = vld [vmem:[#allocation4 + $0x38] sm:$0xff]
    %v91 = vld [vmem:[#allocation4 + $0x40] sm:$0xff]
    %v92 = vld [vmem:[#allocation4 + $0x48] sm:$0xff]
    %v93 = vld [vmem:[#allocation4 + $0x50] sm:$0xff]
    %v94 = vld [vmem:[#allocation4 + $0x58] sm:$0xff]
    %v95 = vld [vmem:[#allocation4 + $0x60] sm:$0xff]
    %v96 = vld [vmem:[#allocation4 + $0x68] sm:$0xff]
    %v97 = vld [vmem:[#allocation4 + $0x70] sm:$0xff]
    %v98 = vld [vmem:[#allocation4 + $0x78] sm:$0xff]
    %v99 = vld [vmem:[#allocation4 + $0x80] sm:$0xff]
    %v100 = vld [vmem:[#allocation4 + $0x88] sm:$0xff]
    %v101 = vld [vmem:[#allocation4 + $0x90] sm:$0xff]
    %v102 = vld [vmem:[#allocation4 + $0x98] sm:$0xff]
    %v103 = vld [vmem:[#allocation4 + $0xa0] sm:$0xff]
    %v104 = vld [vmem:[#allocation4 + $0xa8] sm:$0xff]
    %v105 = vld [vmem:[#allocation4 + $0xb0] sm:$0xff]
    %v106 = vld [vmem:[#allocation4 + $0xb8] sm:$0xff]
    %v107 = vld [vmem:[#allocation4 + $0xc0] sm:$0xff]
    %v108 = vld [vmem:[#allocation4 + $0xc8] sm:$0xff]
    %v109 = vld [vmem:[#allocation4 + $0xd0] sm:$0xff]
    %v110 = vld [vmem:[#allocation4 + $0xd8] sm:$0xff]
    %v111 = vld [vmem:[#allocation4 + $0xe0] sm:$0xff]
    %v112 = vld [vmem:[#allocation4 + $0xe8] sm:$0xff]
    %v113 = vld [vmem:[#allocation4 + $0xf0] sm:$0xff]
    %v114 = vld [vmem:[#allocation4 + $0xf8] sm:$0xff]
    %115 = vmatpush.msra.mxu0 %v113
    %116 = vmatpush.msra.mxu0 %v111
    %117 = vmatpush.msra.mxu0 %v109
    %118 = vmatpush.msra.mxu0 %v107
    %119 = vmatpush.msra.mxu0 %v105
    %120 = vmatpush.msra.mxu0 %v103
    %121 = vmatpush.msra.mxu0 %v101
    %122 = vmatpush.msra.mxu0 %v99
    %123 = vmatpush.msra.mxu0 %v97
    %124 = vmatpush.msra.mxu0 %v95
    %125 = vmatpush.msra.mxu0 %v93
    %126 = vmatpush.msra.mxu0 %v91
    %127 = vmatpush.msra.mxu0 %v89
    %128 = vmatpush.msra.mxu0 %v87
    %129 = vmatpush.msra.mxu0 %v85
    %130 = vmatpush.msra.mxu0 %v83
    %131 = vmatmul.f32.gmra.mxu0 %v79
    %v132 = vpop.f32.mrf.mxu0
    %v133 = vadd.f32 0.0, %v132
    %134 = vmatmul.f32.gmra.mxu0 %v80
    %v135 = vpop.f32.mrf.mxu0
    %v136 = vadd.f32 0.0, %v135
    %137 = vmatmul.f32.gmra.mxu0 %v81
    %v138 = vpop.f32.mrf.mxu0
    %v139 = vadd.f32 0.0, %v138
    %140 = vmatmul.f32.gmra.mxu0 %v82
    %v141 = vpop.f32.mrf.mxu0
    %v142 = vadd.f32 0.0, %v141
    %143 = vdwg.mxu0
    %144 = vmatpush.msra.mxu0 %v114
    %145 = vmatpush.msra.mxu0 %v112
    %146 = vmatpush.msra.mxu0 %v110
    %147 = vmatpush.msra.mxu0 %v108
    %148 = vmatpush.msra.mxu0 %v106
    %149 = vmatpush.msra.mxu0 %v104
    %150 = vmatpush.msra.mxu0 %v102
    %151 = vmatpush.msra.mxu0 %v100
    %152 = vmatpush.msra.mxu0 %v98
    %153 = vmatpush.msra.mxu0 %v96
    %154 = vmatpush.msra.mxu0 %v94
    %155 = vmatpush.msra.mxu0 %v92
    %156 = vmatpush.msra.mxu0 %v90
    %157 = vmatpush.msra.mxu0 %v88
    %158 = vmatpush.msra.mxu0 %v86
    %159 = vmatpush.msra.mxu0 %v84
    %160 = vmatmul.f32.gmra.mxu0 %v79
    %v161 = vpop.f32.mrf.mxu0
    %v162 = vadd.f32 0.0, %v161
    %163 = vmatmul.f32.gmra.mxu0 %v80
    %v164 = vpop.f32.mrf.mxu0
    %v165 = vadd.f32 0.0, %v164
    %166 = vmatmul.f32.gmra.mxu0 %v81
    %v167 = vpop.f32.mrf.mxu0
    %v168 = vadd.f32 0.0, %v167
    %169 = vmatmul.f32.gmra.mxu0 %v82
    %v170 = vpop.f32.mrf.mxu0
    %v171 = vadd.f32 0.0, %v170
    %172 = vdwg.mxu0
    %v174 = vperm.slane %v78, 0
    %v175 = vperm.slane %v78, 1
    %v178 = vadd.f32 %v174, %v133
    %v179 = vadd.f32 %v175, %v162
    %v180 = vadd.f32 %v174, %v136
    %v181 = vadd.f32 %v175, %v165
    %v182 = vadd.f32 %v174, %v139
    %v183 = vadd.f32 %v175, %v168
    %v184 = vadd.f32 %v174, %v142
    %v185 = vadd.f32 %v175, %v171
    %v186 = vld [vmem:[#allocation2 + $0x1] sm:$0xff]
    %v187 = vld [vmem:[#allocation2 + $0x9] sm:$0xff]
    %v188 = vld [vmem:[#allocation2 + $0x19] sm:$0xff]
    %v189 = vld [vmem:[#allocation2 + $0x21] sm:$0xff]
    %s190 = scalar_lea.vmem [#allocation4], 256
    %v191 = vld [vmem:[%s190] sm:$0xff]
    %v192 = vld [vmem:[%s190 + $0x8] sm:$0xff]
    %v193 = vld [vmem:[%s190 + $0x10] sm:$0xff]
    %v194 = vld [vmem:[%s190 + $0x18] sm:$0xff]
    %v195 = vld [vmem:[%s190 + $0x20] sm:$0xff]
    %v196 = vld [vmem:[%s190 + $0x28] sm:$0xff]
    %v197 = vld [vmem:[%s190 + $0x30] sm:$0xff]
    %v198 = vld [vmem:[%s190 + $0x38] sm:$0xff]
    %v199 = vld [vmem:[%s190 + $0x40] sm:$0xff]
    %v200 = vld [vmem:[%s190 + $0x48] sm:$0xff]
    %v201 = vld [vmem:[%s190 + $0x50] sm:$0xff]
    %v202 = vld [vmem:[%s190 + $0x58] sm:$0xff]
    %v203 = vld [vmem:[%s190 + $0x60] sm:$0xff]
    %v204 = vld [vmem:[%s190 + $0x68] sm:$0xff]
    %v205 = vld [vmem:[%s190 + $0x70] sm:$0xff]
    %v206 = vld [vmem:[%s190 + $0x78] sm:$0xff]
    %v207 = vld [vmem:[%s190 + $0x80] sm:$0xff]
    %v208 = vld [vmem:[%s190 + $0x88] sm:$0xff]
    %v209 = vld [vmem:[%s190 + $0x90] sm:$0xff]
    %v210 = vld [vmem:[%s190 + $0x98] sm:$0xff]
    %v211 = vld [vmem:[%s190 + $0xa0] sm:$0xff]
    %v212 = vld [vmem:[%s190 + $0xa8] sm:$0xff]
    %v213 = vld [vmem:[%s190 + $0xb0] sm:$0xff]
    %v214 = vld [vmem:[%s190 + $0xb8] sm:$0xff]
    %v215 = vld [vmem:[%s190 + $0xc0] sm:$0xff]
    %v216 = vld [vmem:[%s190 + $0xc8] sm:$0xff]
    %v217 = vld [vmem:[%s190 + $0xd0] sm:$0xff]
    %v218 = vld [vmem:[%s190 + $0xd8] sm:$0xff]
    %v219 = vld [vmem:[%s190 + $0xe0] sm:$0xff]
    %v220 = vld [vmem:[%s190 + $0xe8] sm:$0xff]
    %v221 = vld [vmem:[%s190 + $0xf0] sm:$0xff]
    %v222 = vld [vmem:[%s190 + $0xf8] sm:$0xff]
    %223 = vmatpush.msra.mxu0 %v221
    %224 = vmatpush.msra.mxu0 %v219
    %225 = vmatpush.msra.mxu0 %v217
    %226 = vmatpush.msra.mxu0 %v215
    %227 = vmatpush.msra.mxu0 %v213
    %228 = vmatpush.msra.mxu0 %v211
    %229 = vmatpush.msra.mxu0 %v209
    %230 = vmatpush.msra.mxu0 %v207
    %231 = vmatpush.msra.mxu0 %v205
    %232 = vmatpush.msra.mxu0 %v203
    %233 = vmatpush.msra.mxu0 %v201
    %234 = vmatpush.msra.mxu0 %v199
    %235 = vmatpush.msra.mxu0 %v197
    %236 = vmatpush.msra.mxu0 %v195
    %237 = vmatpush.msra.mxu0 %v193
    %238 = vmatpush.msra.mxu0 %v191
    %239 = vmatmul.f32.gmra.mxu0 %v186
    %v240 = vpop.f32.mrf.mxu0
    %v241 = vadd.f32 0.0, %v240
    %242 = vmatmul.f32.gmra.mxu0 %v187
    %v243 = vpop.f32.mrf.mxu0
    %v244 = vadd.f32 0.0, %v243
    %245 = vmatmul.f32.gmra.mxu0 %v188
    %v246 = vpop.f32.mrf.mxu0
    %v247 = vadd.f32 0.0, %v246
    %248 = vmatmul.f32.gmra.mxu0 %v189
    %v249 = vpop.f32.mrf.mxu0
    %v250 = vadd.f32 0.0, %v249
    %251 = vdwg.mxu0
    %252 = vmatpush.msra.mxu0 %v222
    %253 = vmatpush.msra.mxu0 %v220
    %254 = vmatpush.msra.mxu0 %v218
    %255 = vmatpush.msra.mxu0 %v216
    %256 = vmatpush.msra.mxu0 %v214
    %257 = vmatpush.msra.mxu0 %v212
    %258 = vmatpush.msra.mxu0 %v210
    %259 = vmatpush.msra.mxu0 %v208
    %260 = vmatpush.msra.mxu0 %v206
    %261 = vmatpush.msra.mxu0 %v204
    %262 = vmatpush.msra.mxu0 %v202
    %263 = vmatpush.msra.mxu0 %v200
    %264 = vmatpush.msra.mxu0 %v198
    %265 = vmatpush.msra.mxu0 %v196
    %266 = vmatpush.msra.mxu0 %v194
    %267 = vmatpush.msra.mxu0 %v192
    %268 = vmatmul.f32.gmra.mxu0 %v186
    %v269 = vpop.f32.mrf.mxu0
    %v270 = vadd.f32 0.0, %v269
    %271 = vmatmul.f32.gmra.mxu0 %v187
    %v272 = vpop.f32.mrf.mxu0
    %v273 = vadd.f32 0.0, %v272
    %274 = vmatmul.f32.gmra.mxu0 %v188
    %v275 = vpop.f32.mrf.mxu0
    %v276 = vadd.f32 0.0, %v275
    %277 = vmatmul.f32.gmra.mxu0 %v189
    %v278 = vpop.f32.mrf.mxu0
    %v279 = vadd.f32 0.0, %v278
    %280 = vdwg.mxu0
    %v281 = vadd.f32 %v178, %v241
    %v282 = vadd.f32 %v179, %v270
    %v283 = vadd.f32 %v180, %v244
    %v284 = vadd.f32 %v181, %v273
    %v285 = vadd.f32 %v182, %v247
    %v286 = vadd.f32 %v183, %v276
    %v287 = vadd.f32 %v184, %v250
    %v288 = vadd.f32 %v185, %v279
    %v289 = vld [vmem:[#allocation2 + $0x2] sm:$0xff]
    %v290 = vld [vmem:[#allocation2 + $0xa] sm:$0xff]
    %v291 = vld [vmem:[#allocation2 + $0x1a] sm:$0xff]
    %v292 = vld [vmem:[#allocation2 + $0x22] sm:$0xff]
    %s293 = scalar_lea.vmem [#allocation4], 512
    %v294 = vld [vmem:[%s293] sm:$0xff]
    %v295 = vld [vmem:[%s293 + $0x8] sm:$0xff]
    %v296 = vld [vmem:[%s293 + $0x10] sm:$0xff]
    %v297 = vld [vmem:[%s293 + $0x18] sm:$0xff]
    %v298 = vld [vmem:[%s293 + $0x20] sm:$0xff]
    %v299 = vld [vmem:[%s293 + $0x28] sm:$0xff]
    %v300 = vld [vmem:[%s293 + $0x30] sm:$0xff]
    %v301 = vld [vmem:[%s293 + $0x38] sm:$0xff]
    %v302 = vld [vmem:[%s293 + $0x40] sm:$0xff]
    %v303 = vld [vmem:[%s293 + $0x48] sm:$0xff]
    %v304 = vld [vmem:[%s293 + $0x50] sm:$0xff]
    %v305 = vld [vmem:[%s293 + $0x58] sm:$0xff]
    %v306 = vld [vmem:[%s293 + $0x60] sm:$0xff]
    %v307 = vld [vmem:[%s293 + $0x68] sm:$0xff]
    %v308 = vld [vmem:[%s293 + $0x70] sm:$0xff]
    %v309 = vld [vmem:[%s293 + $0x78] sm:$0xff]
    %v310 = vld [vmem:[%s293 + $0x80] sm:$0xff]
    %v311 = vld [vmem:[%s293 + $0x88] sm:$0xff]
    %v312 = vld [vmem:[%s293 + $0x90] sm:$0xff]
    %v313 = vld [vmem:[%s293 + $0x98] sm:$0xff]
    %v314 = vld [vmem:[%s293 + $0xa0] sm:$0xff]
    %v315 = vld [vmem:[%s293 + $0xa8] sm:$0xff]
    %v316 = vld [vmem:[%s293 + $0xb0] sm:$0xff]
    %v317 = vld [vmem:[%s293 + $0xb8] sm:$0xff]
    %v318 = vld [vmem:[%s293 + $0xc0] sm:$0xff]
    %v319 = vld [vmem:[%s293 + $0xc8] sm:$0xff]
    %v320 = vld [vmem:[%s293 + $0xd0] sm:$0xff]
    %v321 = vld [vmem:[%s293 + $0xd8] sm:$0xff]
    %v322 = vld [vmem:[%s293 + $0xe0] sm:$0xff]
    %v323 = vld [vmem:[%s293 + $0xe8] sm:$0xff]
    %v324 = vld [vmem:[%s293 + $0xf0] sm:$0xff]
    %v325 = vld [vmem:[%s293 + $0xf8] sm:$0xff]
    %326 = vmatpush.msra.mxu0 %v324
    %327 = vmatpush.msra.mxu0 %v322
    %328 = vmatpush.msra.mxu0 %v320
    %329 = vmatpush.msra.mxu0 %v318
    %330 = vmatpush.msra.mxu0 %v316
    %331 = vmatpush.msra.mxu0 %v314
    %332 = vmatpush.msra.mxu0 %v312
    %333 = vmatpush.msra.mxu0 %v310
    %334 = vmatpush.msra.mxu0 %v308
    %335 = vmatpush.msra.mxu0 %v306
    %336 = vmatpush.msra.mxu0 %v304
    %337 = vmatpush.msra.mxu0 %v302
    %338 = vmatpush.msra.mxu0 %v300
    %339 = vmatpush.msra.mxu0 %v298
    %340 = vmatpush.msra.mxu0 %v296
    %341 = vmatpush.msra.mxu0 %v294
    %342 = vmatmul.f32.gmra.mxu0 %v289
    %v343 = vpop.f32.mrf.mxu0
    %v344 = vadd.f32 0.0, %v343
    %345 = vmatmul.f32.gmra.mxu0 %v290
    %v346 = vpop.f32.mrf.mxu0
    %v347 = vadd.f32 0.0, %v346
    %348 = vmatmul.f32.gmra.mxu0 %v291
    %v349 = vpop.f32.mrf.mxu0
    %v350 = vadd.f32 0.0, %v349
    %351 = vmatmul.f32.gmra.mxu0 %v292
    %v352 = vpop.f32.mrf.mxu0
    %v353 = vadd.f32 0.0, %v352
    %354 = vdwg.mxu0
    %355 = vmatpush.msra.mxu0 %v325
    %356 = vmatpush.msra.mxu0 %v323
    %357 = vmatpush.msra.mxu0 %v321
    %358 = vmatpush.msra.mxu0 %v319
    %359 = vmatpush.msra.mxu0 %v317
    %360 = vmatpush.msra.mxu0 %v315
    %361 = vmatpush.msra.mxu0 %v313
    %362 = vmatpush.msra.mxu0 %v311
    %363 = vmatpush.msra.mxu0 %v309
    %364 = vmatpush.msra.mxu0 %v307
    %365 = vmatpush.msra.mxu0 %v305
    %366 = vmatpush.msra.mxu0 %v303
    %367 = vmatpush.msra.mxu0 %v301
    %368 = vmatpush.msra.mxu0 %v299
    %369 = vmatpush.msra.mxu0 %v297
    %370 = vmatpush.msra.mxu0 %v295
    %371 = vmatmul.f32.gmra.mxu0 %v289
    %v372 = vpop.f32.mrf.mxu0
    %v373 = vadd.f32 0.0, %v372
    %374 = vmatmul.f32.gmra.mxu0 %v290
    %v375 = vpop.f32.mrf.mxu0
    %v376 = vadd.f32 0.0, %v375
    %377 = vmatmul.f32.gmra.mxu0 %v291
    %v378 = vpop.f32.mrf.mxu0
    %v379 = vadd.f32 0.0, %v378
    %380 = vmatmul.f32.gmra.mxu0 %v292
    %v381 = vpop.f32.mrf.mxu0
    %v382 = vadd.f32 0.0, %v381
    %383 = vdwg.mxu0
    %v384 = vadd.f32 %v281, %v344
    %v385 = vadd.f32 %v282, %v373
    %v386 = vadd.f32 %v283, %v347
    %v387 = vadd.f32 %v284, %v376
    %v388 = vadd.f32 %v285, %v350
    %v389 = vadd.f32 %v286, %v379
    %v390 = vadd.f32 %v287, %v353
    %v391 = vadd.f32 %v288, %v382
    %v392 = vld [vmem:[%s3] sm:$0x7]
    %v393 = vld [vmem:[%s4] sm:$0x3]
    %v394 = vadd.f32 %v384, %v386
    %v395 = vadd.f32 %v394, %v388
    %v396 = vadd.f32 %v395, %v390
    %v397 = vrot.slane %v396, 4
    %v398 = vadd.f32 %v396, %v397
    %v399 = vrot.slane %v398, 2
    %v400 = vadd.f32 %v398, %v399
    %v401 = vrot.slane %v400, 1
    %v402 = vadd.f32 %v400, %v401
    %403 = vrot.lane.b32.xlu0 %v402, 8
    %v404 = vpop.permute.xlu0 %403
    %v405 = vadd.f32 %v402, %v404
    %406 = vrot.lane.b32.xlu0 %v405, 16
    %v407 = vpop.permute.xlu0 %406
    %v408 = vadd.f32 %v405, %v407
    %409 = vrot.lane.b32.xlu0 %v408, 32
    %v410 = vpop.permute.xlu0 %409
    %v411 = vadd.f32 %v408, %v410
    %412 = vrot.lane.b32.xlu0 %v411, 64
    %v413 = vpop.permute.xlu0 %412
    %v414 = vadd.f32 %v411, %v413
    %v415 = vadd.f32 %v385, %v387
    %v416 = vadd.f32 %v415, %v389
    %v417 = vadd.f32 %v416, %v391
    %v418 = vrot.slane %v417, 4
    %v419 = vadd.f32 %v417, %v418
    %v420 = vrot.slane %v419, 2
    %v421 = vadd.f32 %v419, %v420
    %v422 = vrot.slane %v421, 1
    %v423 = vadd.f32 %v421, %v422
    %424 = vrot.lane.b32.xlu0 %v423, 8
    %v425 = vpop.permute.xlu0 %424
    %v426 = vadd.f32 %v423, %v425
    %427 = vrot.lane.b32.xlu0 %v426, 16
    %v428 = vpop.permute.xlu0 %427
    %v429 = vadd.f32 %v426, %v428
    %430 = vrot.lane.b32.xlu0 %v429, 32
    %v431 = vpop.permute.xlu0 %430
    %v432 = vadd.f32 %v429, %v431
    %433 = vrot.lane.b32.xlu0 %v432, 64
    %v434 = vpop.permute.xlu0 %433
    %v435 = vadd.f32 %v432, %v434
    %v436 = vmul.f32 %v384, %v384
    %v437 = vmul.f32 %v386, %v386
    %v438 = vmul.f32 %v388, %v388
    %v439 = vmul.f32 %v390, %v390
    %v440 = vadd.f32 %v436, %v437
    %v441 = vadd.f32 %v440, %v438
    %v442 = vadd.f32 %v441, %v439
    %v443 = vrot.slane %v442, 4
    %v444 = vadd.f32 %v442, %v443
    %v445 = vrot.slane %v444, 2
    %v446 = vadd.f32 %v444, %v445
    %v447 = vrot.slane %v446, 1
    %v448 = vadd.f32 %v446, %v447
    %449 = vrot.lane.b32.xlu0 %v448, 8
    %v450 = vpop.permute.xlu0 %449
    %v451 = vadd.f32 %v448, %v450
    %452 = vrot.lane.b32.xlu0 %v451, 16
    %v453 = vpop.permute.xlu0 %452
    %v454 = vadd.f32 %v451, %v453
    %455 = vrot.lane.b32.xlu0 %v454, 32
    %v456 = vpop.permute.xlu0 %455
    %v457 = vadd.f32 %v454, %v456
    %458 = vrot.lane.b32.xlu0 %v457, 64
    %v459 = vpop.permute.xlu0 %458
    %v460 = vadd.f32 %v457, %v459
    %v461 = vmul.f32 %v385, %v385
    %v462 = vmul.f32 %v387, %v387
    %v463 = vmul.f32 %v389, %v389
    %v464 = vmul.f32 %v391, %v391
    %v465 = vadd.f32 %v461, %v462
    %v466 = vadd.f32 %v465, %v463
    %v467 = vadd.f32 %v466, %v464
    %v468 = vrot.slane %v467, 4
    %v469 = vadd.f32 %v467, %v468
    %v470 = vrot.slane %v469, 2
    %v471 = vadd.f32 %v469, %v470
    %v472 = vrot.slane %v471, 1
    %v473 = vadd.f32 %v471, %v472
    %474 = vrot.lane.b32.xlu0 %v473, 8
    %v475 = vpop.permute.xlu0 %474
    %v476 = vadd.f32 %v473, %v475
    %477 = vrot.lane.b32.xlu0 %v476, 16
    %v478 = vpop.permute.xlu0 %477
    %v479 = vadd.f32 %v476, %v478
    %480 = vrot.lane.b32.xlu0 %v479, 32
    %v481 = vpop.permute.xlu0 %480
    %v482 = vadd.f32 %v479, %v481
    %483 = vrot.lane.b32.xlu0 %v482, 64
    %v484 = vpop.permute.xlu0 %483
    %v485 = vadd.f32 %v482, %v484
    %v486 = vmul.f32 %v384, %v385
    %v487 = vmul.f32 %v386, %v387
    %v488 = vmul.f32 %v388, %v389
    %v489 = vmul.f32 %v390, %v391
    %v490 = vadd.f32 %v486, %v487
    %v491 = vadd.f32 %v490, %v488
    %v492 = vadd.f32 %v491, %v489
    %v493 = vrot.slane %v492, 4
    %v494 = vadd.f32 %v492, %v493
    %v495 = vrot.slane %v494, 2
    %v496 = vadd.f32 %v494, %v495
    %v497 = vrot.slane %v496, 1
    %v498 = vadd.f32 %v496, %v497
    %499 = vrot.lane.b32.xlu0 %v498, 8
    %v500 = vpop.permute.xlu0 %499
    %v501 = vadd.f32 %v498, %v500
    %502 = vrot.lane.b32.xlu0 %v501, 16
    %v503 = vpop.permute.xlu0 %502
    %v504 = vadd.f32 %v501, %v503
    %505 = vrot.lane.b32.xlu0 %v504, 32
    %v506 = vpop.permute.xlu0 %505
    %v507 = vadd.f32 %v504, %v506
    %508 = vrot.lane.b32.xlu0 %v507, 64
    %v509 = vpop.permute.xlu0 %508
    %v510 = vadd.f32 %v507, %v509
    %v511 = vmul.f32 %v414, 0.001953125
    %v512 = vmul.f32 %v435, 0.001953125
    %v513 = vmul.f32 %v460, 0.001953125
    %v514 = vmul.f32 %v511, %v511
    %v515 = vsub.f32 %v513, %v514
    %v516 = vadd.f32 %v515, 1e-05
    %v517 = vmul.f32 %v485, 0.001953125
    %v518 = vmul.f32 %v512, %v512
    %v519 = vsub.f32 %v517, %v518
    %v520 = vadd.f32 %v519, 1e-05
    %v521 = vmul.f32 %v510, 0.001953125
    %v522 = vmul.f32 %v511, %v512
    %v523 = vsub.f32 %v521, %v522
    %v524 = vmul.f32 %v516, %v520
    %v525 = vmul.f32 %v523, %v523
    %v526 = vsub.f32 %v524, %v525
    %v527 = vrsqrt.pop %v526
    %v528 = vmul.f32 %v527, %v526
    %v529 = vmul.f32 %v528, %v527
    %v530 = vmul.f32 0.5, %v529
    %v531 = vsub.f32 1.5, %v530
    %v532 = vmul.f32 %v527, %v531
    %v533 = vmul.f32 %v526, %v532
    %vm534 = vcmp.eq.f32.partialorder %v526, inf
    %v535 = vsel %vm534, %v526, %v533
    %vm536 = vcmp.eq.f32.partialorder %v526, 0.0
    %v537 = vand.u32 %v526, 2147483648
    %v538 = vsel %vm536, %v537, %v535
    %v539 = vadd.f32 %v516, %v520
    %v540 = vmul.f32 %v538, 2.0
    %v541 = vadd.f32 %v539, %v540
    %v542 = vrsqrt.pop %v541
    %v543 = vmul.f32 %v542, %v541
    %v544 = vmul.f32 %v543, %v542
    %v545 = vmul.f32 0.5, %v544
    %v546 = vsub.f32 1.5, %v545
    %v547 = vmul.f32 %v542, %v546
    %v548 = vmul.f32 %v541, %v547
    %vm549 = vcmp.eq.f32.partialorder %v541, inf
    %v550 = vsel %vm549, %v541, %v548
    %vm551 = vcmp.eq.f32.partialorder %v541, 0.0
    %v552 = vand.u32 %v541, 2147483648
    %v553 = vsel %vm551, %v552, %v550
    %v554 = vmul.f32 %v538, %v553
    %v555 = vrcp.pop %v554
    %v556 = vmul.f32 %v554, %v555
    %v557 = vsub.f32 1.0, %v556
    %v558 = vmul.f32 %v555, %v557
    %v559 = vadd.f32 %v555, %v558
    %vm560 = vweird.f32 %v554
    %vm561 = vweird.f32 %v555
    %vm562 = vmor %vm560, %vm561
    %v563 = vsel %vm562, %v555, %v559
    %v564 = vand.u32 2147483647, %v554
    %vm565 = vcmp.eq.f32.partialorder %v564, 8.507059e+37
    %v566 = vand.u32 %v554, 2147483648
    %v567 = vor.u32 1.1754944e-38, %v566
    %v568 = vsel %vm565, %v567, %v563
    %v569 = vmul.f32 1.0, %v568
    %v570 = vadd.f32 %v520, %v538
    %v571 = vmul.f32 %v570, %v569
    %v572 = vadd.f32 %v516, %v538
    %v573 = vmul.f32 %v572, %v569
    %v574 = vsub.f32 0.0, %v523
    %v575 = vmul.f32 %v574, %v569
    %v576 = vmul.f32 %v392, %v571
    %v578 = vrot.slane %v575, 6
    %v580 = vmul.f32 %v392, %v578
    %v582 = vrot.slane %v580, 2
    %v584 = vadd.f32 %v576, %v582
    %v585 = vmul.f32 %v392, %v575
    %v587 = vrot.slane %v573, 6
    %v589 = vmul.f32 %v392, %v587
    %v591 = vrot.slane %v589, 2
    %v593 = vadd.f32 %v585, %v591
    %v595 = vrot.slane %v571, 6
    %v597 = vmul.f32 %v392, %v595
    %v598 = vrot.slane %v575, 7
    %v600 = vmul.f32 %v392, %v598
    %v602 = vrot.slane %v600, 7
    %v604 = vadd.f32 %v597, %v602
    %v605 = vrot.slane %v573, 7
    %v607 = vmul.f32 %v392, %v605
    %v609 = vrot.slane %v607, 7
    %v611 = vadd.f32 %v580, %v609
    %v612 = vmul.f32 %v584, %v511
    %v613 = vsub.f32 %v393, %v612
    %v614 = vmul.f32 %v593, %v512
    %v615 = vsub.f32 %v613, %v614
    %v617 = vrot.slane %v511, 6
    %v619 = vmul.f32 %v604, %v617
    %v621 = vrot.slane %v619, 1
    %v623 = vsub.f32 %v393, %v621
    %v625 = vrot.slane %v512, 6
    %v627 = vmul.f32 %v611, %v625
    %v629 = vrot.slane %v627, 1
    %v631 = vsub.f32 %v623, %v629
    %v632 = vperm.slane %v584, 0
    %v633 = vmul.f32 %v632, %v384
    %v634 = vmul.f32 %v632, %v386
    %v635 = vmul.f32 %v632, %v388
    %v636 = vmul.f32 %v632, %v390
    %v637 = vperm.slane %v593, 0
    %v638 = vmul.f32 %v637, %v385
    %v639 = vmul.f32 %v637, %v387
    %v640 = vmul.f32 %v637, %v389
    %v641 = vmul.f32 %v637, %v391
    %v642 = vadd.f32 %v633, %v638
    %v643 = vadd.f32 %v634, %v639
    %v644 = vadd.f32 %v635, %v640
    %v645 = vadd.f32 %v636, %v641
    %v646 = vperm.slane %v615, 0
    %v647 = vadd.f32 %v642, %v646
    %v648 = vadd.f32 %v643, %v646
    %v649 = vadd.f32 %v644, %v646
    %v650 = vadd.f32 %v645, %v646
    %v651 = vmax.f32 %v647, 0.0
    %v652 = vmax.f32 %v648, 0.0
    %v653 = vmax.f32 %v649, 0.0
    %v654 = vmax.f32 %v650, 0.0
    %v655 = vperm.slane %v604, 2
    %v656 = vmul.f32 %v655, %v384
    %v657 = vmul.f32 %v655, %v386
    %v658 = vmul.f32 %v655, %v388
    %v659 = vmul.f32 %v655, %v390
    %v660 = vperm.slane %v611, 2
    %v661 = vmul.f32 %v660, %v385
    %v662 = vmul.f32 %v660, %v387
    %v663 = vmul.f32 %v660, %v389
    %v664 = vmul.f32 %v660, %v391
    %v665 = vadd.f32 %v656, %v661
    %v666 = vadd.f32 %v657, %v662
    %v667 = vadd.f32 %v658, %v663
    %v668 = vadd.f32 %v659, %v664
    %v669 = vperm.slane %v631, 1
    %v670 = vadd.f32 %v665, %v669
    %v671 = vadd.f32 %v666, %v669
    %v672 = vadd.f32 %v667, %v669
    %v673 = vadd.f32 %v668, %v669
    %v674 = vmax.f32 %v670, 0.0
    %v675 = vmax.f32 %v671, 0.0
    %v676 = vmax.f32 %v672, 0.0
    %v677 = vmax.f32 %v673, 0.0
    %v678 = vlaneseq
    %vm679 = vcmp.ge.s32.totalorder %v678, 0
    %vm680 = vcmp.lt.s32.totalorder %v678, 256
    %vm681 = vmand %vm679, %vm680
    %682 = vst.msk [vmem:[#allocation3] ss:$8 sm:$0x3] %vm681, 0.0
    %683 = vst.msk [vmem:[#allocation3] ss:$8 sm:$0x0] %vm681, 0.0
    %s684 = scalar_lea.vmem [#allocation3], 48
    %685 = vst.msk [vmem:[%s684] ss:$8 sm:$0x3] %vm681, 0.0
    %686 = vst.msk [vmem:[%s684] ss:$8 sm:$0x0] %vm681, 0.0
    %s687 = scalar_lea.vmem [#allocation3], 33
    %688 = vst.msk [vmem:[%s687] ss:$8 sm:$0x3] %vm681, 0.0
    %689 = vst.msk [vmem:[%s687] ss:$8 sm:$0x0] %vm681, 0.0
    %s690 = scalar_lea.vmem [#allocation3], 81
    %691 = vst.msk [vmem:[%s690] ss:$8 sm:$0x3] %vm681, 0.0
    %692 = vst.msk [vmem:[%s690] ss:$8 sm:$0x0] %vm681, 0.0
    %vm697 = vcmask 1040384
    %v698 = vrot.slane %v651, 7
    %v699 = vrot.slane %v652, 7
    %v700 = vsel %vm697, %v698, %v699
    %v701 = vrot.slane %v653, 7
    %v702 = vrot.slane %v654, 7
    %v703 = vsel %vm697, %v701, %v702
    %710 = vst [vmem:[#allocation3] sm:$0xfe] %v698
    %711 = vst [vmem:[#allocation3 + $0x10] sm:$0xff] %v700
    %712 = vst [vmem:[#allocation3 + $0x20] sm:$0x1] %v699
    %713 = vst [vmem:[#allocation3 + $0x30] sm:$0xfe] %v701
    %714 = vst [vmem:[#allocation3 + $0x40] sm:$0xff] %v703
    %715 = vst [vmem:[#allocation3 + $0x50] sm:$0x1] %v702
    %v720 = vrot.slane %v674, 7
    %v721 = vrot.slane %v675, 7
    %v722 = vsel %vm697, %v720, %v721
    %v723 = vrot.slane %v676, 7
    %v724 = vrot.slane %v677, 7
    %v725 = vsel %vm697, %v723, %v724
    %732 = vst [vmem:[#allocation3 + $0x8] sm:$0xfe] %v720
    %733 = vst [vmem:[#allocation3 + $0x18] sm:$0xff] %v722
    %734 = vst [vmem:[#allocation3 + $0x28] sm:$0x1] %v721
    %735 = vst [vmem:[#allocation3 + $0x38] sm:$0xfe] %v723
    %736 = vst [vmem:[#allocation3 + $0x48] sm:$0xff] %v725
    %737 = vst [vmem:[#allocation3 + $0x58] sm:$0x1] %v724
    %v738 = vld [vmem:[%s6] sm:$0x3]
    %v739 = vld [vmem:[#allocation3] sm:$0xff]
    %v740 = vld [vmem:[#allocation3 + $0x8] sm:$0xff]
    %v741 = vld [vmem:[#allocation3 + $0x10] sm:$0xff]
    %v742 = vld [vmem:[#allocation3 + $0x18] sm:$0xff]
    %v743 = vld [vmem:[#allocation3 + $0x30] sm:$0xff]
    %v744 = vld [vmem:[#allocation3 + $0x38] sm:$0xff]
    %v745 = vld [vmem:[#allocation3 + $0x40] sm:$0xff]
    %v746 = vld [vmem:[#allocation3 + $0x48] sm:$0xff]
    %v747 = vld [vmem:[#allocation6] sm:$0xff]
    %v748 = vld [vmem:[#allocation6 + $0x8] sm:$0xff]
    %v749 = vld [vmem:[#allocation6 + $0x10] sm:$0xff]
    %v750 = vld [vmem:[#allocation6 + $0x18] sm:$0xff]
    %v751 = vld [vmem:[#allocation6 + $0x20] sm:$0xff]
    %v752 = vld [vmem:[#allocation6 + $0x28] sm:$0xff]
    %v753 = vld [vmem:[#allocation6 + $0x30] sm:$0xff]
    %v754 = vld [vmem:[#allocation6 + $0x38] sm:$0xff]
    %v755 = vld [vmem:[#allocation6 + $0x40] sm:$0xff]
    %v756 = vld [vmem:[#allocation6 + $0x48] sm:$0xff]
    %v757 = vld [vmem:[#allocation6 + $0x50] sm:$0xff]
    %v758 = vld [vmem:[#allocation6 + $0x58] sm:$0xff]
    %v759 = vld [vmem:[#allocation6 + $0x60] sm:$0xff]
    %v760 = vld [vmem:[#allocation6 + $0x68] sm:$0xff]
    %v761 = vld [vmem:[#allocation6 + $0x70] sm:$0xff]
    %v762 = vld [vmem:[#allocation6 + $0x78] sm:$0xff]
    %v763 = vld [vmem:[#allocation6 + $0x80] sm:$0xff]
    %v764 = vld [vmem:[#allocation6 + $0x88] sm:$0xff]
    %v765 = vld [vmem:[#allocation6 + $0x90] sm:$0xff]
    %v766 = vld [vmem:[#allocation6 + $0x98] sm:$0xff]
    %v767 = vld [vmem:[#allocation6 + $0xa0] sm:$0xff]
    %v768 = vld [vmem:[#allocation6 + $0xa8] sm:$0xff]
    %v769 = vld [vmem:[#allocation6 + $0xb0] sm:$0xff]
    %v770 = vld [vmem:[#allocation6 + $0xb8] sm:$0xff]
    %v771 = vld [vmem:[#allocation6 + $0xc0] sm:$0xff]
    %v772 = vld [vmem:[#allocation6 + $0xc8] sm:$0xff]
    %v773 = vld [vmem:[#allocation6 + $0xd0] sm:$0xff]
    %v774 = vld [vmem:[#allocation6 + $0xd8] sm:$0xff]
    %v775 = vld [vmem:[#allocation6 + $0xe0] sm:$0xff]
    %v776 = vld [vmem:[#allocation6 + $0xe8] sm:$0xff]
    %v777 = vld [vmem:[#allocation6 + $0xf0] sm:$0xff]
    %v778 = vld [vmem:[#allocation6 + $0xf8] sm:$0xff]
    %v779 = vld [vmem:[#allocation6 + $0x100] sm:$0xff]
    %v780 = vld [vmem:[#allocation6 + $0x108] sm:$0xff]
    %v781 = vld [vmem:[#allocation6 + $0x110] sm:$0xff]
    %v782 = vld [vmem:[#allocation6 + $0x118] sm:$0xff]
    %v783 = vld [vmem:[#allocation6 + $0x120] sm:$0xff]
    %v784 = vld [vmem:[#allocation6 + $0x128] sm:$0xff]
    %v785 = vld [vmem:[#allocation6 + $0x130] sm:$0xff]
    %v786 = vld [vmem:[#allocation6 + $0x138] sm:$0xff]
    %v787 = vld [vmem:[#allocation6 + $0x140] sm:$0xff]
    %v788 = vld [vmem:[#allocation6 + $0x148] sm:$0xff]
    %v789 = vld [vmem:[#allocation6 + $0x150] sm:$0xff]
    %v790 = vld [vmem:[#allocation6 + $0x158] sm:$0xff]
    %v791 = vld [vmem:[#allocation6 + $0x160] sm:$0xff]
    %v792 = vld [vmem:[#allocation6 + $0x168] sm:$0xff]
    %v793 = vld [vmem:[#allocation6 + $0x170] sm:$0xff]
    %v794 = vld [vmem:[#allocation6 + $0x178] sm:$0xff]
    %v795 = vld [vmem:[#allocation6 + $0x180] sm:$0xff]
    %v796 = vld [vmem:[#allocation6 + $0x188] sm:$0xff]
    %v797 = vld [vmem:[#allocation6 + $0x190] sm:$0xff]
    %v798 = vld [vmem:[#allocation6 + $0x198] sm:$0xff]
    %v799 = vld [vmem:[#allocation6 + $0x1a0] sm:$0xff]
    %v800 = vld [vmem:[#allocation6 + $0x1a8] sm:$0xff]
    %v801 = vld [vmem:[#allocation6 + $0x1b0] sm:$0xff]
    %v802 = vld [vmem:[#allocation6 + $0x1b8] sm:$0xff]
    %v803 = vld [vmem:[#allocation6 + $0x1c0] sm:$0xff]
    %v804 = vld [vmem:[#allocation6 + $0x1c8] sm:$0xff]
    %v805 = vld [vmem:[#allocation6 + $0x1d0] sm:$0xff]
    %v806 = vld [vmem:[#allocation6 + $0x1d8] sm:$0xff]
    %v807 = vld [vmem:[#allocation6 + $0x1e0] sm:$0xff]
    %v808 = vld [vmem:[#allocation6 + $0x1e8] sm:$0xff]
    %v809 = vld [vmem:[#allocation6 + $0x1f0] sm:$0xff]
    %v810 = vld [vmem:[#allocation6 + $0x1f8] sm:$0xff]
    %811 = vmatpush.msra.mxu0 %v777
    %812 = vmatpush.msra.mxu0 %v775
    %813 = vmatpush.msra.mxu0 %v773
    %814 = vmatpush.msra.mxu0 %v771
    %815 = vmatpush.msra.mxu0 %v769
    %816 = vmatpush.msra.mxu0 %v767
    %817 = vmatpush.msra.mxu0 %v765
    %818 = vmatpush.msra.mxu0 %v763
    %819 = vmatpush.msra.mxu0 %v761
    %820 = vmatpush.msra.mxu0 %v759
    %821 = vmatpush.msra.mxu0 %v757
    %822 = vmatpush.msra.mxu0 %v755
    %823 = vmatpush.msra.mxu0 %v753
    %824 = vmatpush.msra.mxu0 %v751
    %825 = vmatpush.msra.mxu0 %v749
    %826 = vmatpush.msra.mxu0 %v747
    %827 = vmatmul.f32.gmra.mxu0 %v739
    %v828 = vpop.f32.mrf.mxu0
    %v829 = vadd.f32 0.0, %v828
    %830 = vmatmul.f32.gmra.mxu0 %v741
    %v831 = vpop.f32.mrf.mxu0
    %v832 = vadd.f32 0.0, %v831
    %833 = vmatmul.f32.gmra.mxu0 %v743
    %v834 = vpop.f32.mrf.mxu0
    %v835 = vadd.f32 0.0, %v834
    %836 = vmatmul.f32.gmra.mxu0 %v745
    %v837 = vpop.f32.mrf.mxu0
    %v838 = vadd.f32 0.0, %v837
    %839 = vdwg.mxu0
    %840 = vmatpush.msra.mxu0 %v809
    %841 = vmatpush.msra.mxu0 %v807
    %842 = vmatpush.msra.mxu0 %v805
    %843 = vmatpush.msra.mxu0 %v803
    %844 = vmatpush.msra.mxu0 %v801
    %845 = vmatpush.msra.mxu0 %v799
    %846 = vmatpush.msra.mxu0 %v797
    %847 = vmatpush.msra.mxu0 %v795
    %848 = vmatpush.msra.mxu0 %v793
    %849 = vmatpush.msra.mxu0 %v791
    %850 = vmatpush.msra.mxu0 %v789
    %851 = vmatpush.msra.mxu0 %v787
    %852 = vmatpush.msra.mxu0 %v785
    %853 = vmatpush.msra.mxu0 %v783
    %854 = vmatpush.msra.mxu0 %v781
    %855 = vmatpush.msra.mxu0 %v779
    %856 = vmatmul.f32.gmra.mxu0 %v740
    %v857 = vpop.f32.mrf.mxu0
    %v858 = vadd.f32 %v829, %v857
    %859 = vmatmul.f32.gmra.mxu0 %v742
    %v860 = vpop.f32.mrf.mxu0
    %v861 = vadd.f32 %v832, %v860
    %862 = vmatmul.f32.gmra.mxu0 %v744
    %v863 = vpop.f32.mrf.mxu0
    %v864 = vadd.f32 %v835, %v863
    %865 = vmatmul.f32.gmra.mxu0 %v746
    %v866 = vpop.f32.mrf.mxu0
    %v867 = vadd.f32 %v838, %v866
    %868 = vdwg.mxu0
    %869 = vmatpush.msra.mxu0 %v778
    %870 = vmatpush.msra.mxu0 %v776
    %871 = vmatpush.msra.mxu0 %v774
    %872 = vmatpush.msra.mxu0 %v772
    %873 = vmatpush.msra.mxu0 %v770
    %874 = vmatpush.msra.mxu0 %v768
    %875 = vmatpush.msra.mxu0 %v766
    %876 = vmatpush.msra.mxu0 %v764
    %877 = vmatpush.msra.mxu0 %v762
    %878 = vmatpush.msra.mxu0 %v760
    %879 = vmatpush.msra.mxu0 %v758
    %880 = vmatpush.msra.mxu0 %v756
    %881 = vmatpush.msra.mxu0 %v754
    %882 = vmatpush.msra.mxu0 %v752
    %883 = vmatpush.msra.mxu0 %v750
    %884 = vmatpush.msra.mxu0 %v748
    %885 = vmatmul.f32.gmra.mxu0 %v739
    %v886 = vpop.f32.mrf.mxu0
    %v887 = vadd.f32 0.0, %v886
    %888 = vmatmul.f32.gmra.mxu0 %v741
    %v889 = vpop.f32.mrf.mxu0
    %v890 = vadd.f32 0.0, %v889
    %891 = vmatmul.f32.gmra.mxu0 %v743
    %v892 = vpop.f32.mrf.mxu0
    %v893 = vadd.f32 0.0, %v892
    %894 = vmatmul.f32.gmra.mxu0 %v745
    %v895 = vpop.f32.mrf.mxu0
    %v896 = vadd.f32 0.0, %v895
    %897 = vdwg.mxu0
    %898 = vmatpush.msra.mxu0 %v810
    %899 = vmatpush.msra.mxu0 %v808
    %900 = vmatpush.msra.mxu0 %v806
    %901 = vmatpush.msra.mxu0 %v804
    %902 = vmatpush.msra.mxu0 %v802
    %903 = vmatpush.msra.mxu0 %v800
    %904 = vmatpush.msra.mxu0 %v798
    %905 = vmatpush.msra.mxu0 %v796
    %906 = vmatpush.msra.mxu0 %v794
    %907 = vmatpush.msra.mxu0 %v792
    %908 = vmatpush.msra.mxu0 %v790
    %909 = vmatpush.msra.mxu0 %v788
    %910 = vmatpush.msra.mxu0 %v786
    %911 = vmatpush.msra.mxu0 %v784
    %912 = vmatpush.msra.mxu0 %v782
    %913 = vmatpush.msra.mxu0 %v780
    %914 = vmatmul.f32.gmra.mxu0 %v740
    %v915 = vpop.f32.mrf.mxu0
    %v916 = vadd.f32 %v887, %v915
    %917 = vmatmul.f32.gmra.mxu0 %v742
    %v918 = vpop.f32.mrf.mxu0
    %v919 = vadd.f32 %v890, %v918
    %920 = vmatmul.f32.gmra.mxu0 %v744
    %v921 = vpop.f32.mrf.mxu0
    %v922 = vadd.f32 %v893, %v921
    %923 = vmatmul.f32.gmra.mxu0 %v746
    %v924 = vpop.f32.mrf.mxu0
    %v925 = vadd.f32 %v896, %v924
    %926 = vdwg.mxu0
    %v928 = vperm.slane %v738, 0
    %v929 = vperm.slane %v738, 1
    %v932 = vadd.f32 %v928, %v858
    %v933 = vadd.f32 %v929, %v916
    %v934 = vadd.f32 %v928, %v861
    %v935 = vadd.f32 %v929, %v919
    %v936 = vadd.f32 %v928, %v864
    %v937 = vadd.f32 %v929, %v922
    %v938 = vadd.f32 %v928, %v867
    %v939 = vadd.f32 %v929, %v925
    %v940 = vld [vmem:[#allocation3] sm:$0xfe]
    %v941 = vld [vmem:[#allocation3 + $0x8] sm:$0xfe]
    %v942 = vld [vmem:[#allocation3 + $0x10] sm:$0xff]
    %v943 = vld [vmem:[#allocation3 + $0x18] sm:$0xff]
    %v944 = vld [vmem:[#allocation3 + $0x20] sm:$0x1]
    %v945 = vld [vmem:[#allocation3 + $0x28] sm:$0x1]
    %v946 = vld [vmem:[#allocation3 + $0x30] sm:$0xfe]
    %v947 = vld [vmem:[#allocation3 + $0x38] sm:$0xfe]
    %v948 = vld [vmem:[#allocation3 + $0x40] sm:$0xff]
    %v949 = vld [vmem:[#allocation3 + $0x48] sm:$0xff]
    %v950 = vld [vmem:[#allocation3 + $0x50] sm:$0x1]
    %v951 = vld [vmem:[#allocation3 + $0x58] sm:$0x1]
    %vm964 = vcmask 1046528
    %v965 = vrot.slane %v940, 1
    %v966 = vrot.slane %v942, 1
    %v967 = vsel %vm964, %v965, %v966
    %v968 = vrot.slane %v941, 1
    %v969 = vrot.slane %v943, 1
    %v970 = vsel %vm964, %v968, %v969
    %v971 = vrot.slane %v944, 1
    %v972 = vsel %vm964, %v966, %v971
    %v973 = vrot.slane %v945, 1
    %v974 = vsel %vm964, %v969, %v973
    %v975 = vrot.slane %v946, 1
    %v976 = vrot.slane %v948, 1
    %v977 = vsel %vm964, %v975, %v976
    %v978 = vrot.slane %v947, 1
    %v979 = vrot.slane %v949, 1
    %v980 = vsel %vm964, %v978, %v979
    %v981 = vrot.slane %v950, 1
    %v982 = vsel %vm964, %v976, %v981
    %v983 = vrot.slane %v951, 1
    %v984 = vsel %vm964, %v979, %v983
    %s993 = scalar_lea.vmem [#allocation6], 512
    %v994 = vld [vmem:[%s993] sm:$0xff]
    %v995 = vld [vmem:[%s993 + $0x8] sm:$0xff]
    %v996 = vld [vmem:[%s993 + $0x10] sm:$0xff]
    %v997 = vld [vmem:[%s993 + $0x18] sm:$0xff]
    %v998 = vld [vmem:[%s993 + $0x20] sm:$0xff]
    %v999 = vld [vmem:[%s993 + $0x28] sm:$0xff]
    %v1000 = vld [vmem:[%s993 + $0x30] sm:$0xff]
    %v1001 = vld [vmem:[%s993 + $0x38] sm:$0xff]
    %v1002 = vld [vmem:[%s993 + $0x40] sm:$0xff]
    %v1003 = vld [vmem:[%s993 + $0x48] sm:$0xff]
    %v1004 = vld [vmem:[%s993 + $0x50] sm:$0xff]
    %v1005 = vld [vmem:[%s993 + $0x58] sm:$0xff]
    %v1006 = vld [vmem:[%s993 + $0x60] sm:$0xff]
    %v1007 = vld [vmem:[%s993 + $0x68] sm:$0xff]
    %v1008 = vld [vmem:[%s993 + $0x70] sm:$0xff]
    %v1009 = vld [vmem:[%s993 + $0x78] sm:$0xff]
    %v1010 = vld [vmem:[%s993 + $0x80] sm:$0xff]
    %v1011 = vld [vmem:[%s993 + $0x88] sm:$0xff]
    %v1012 = vld [vmem:[%s993 + $0x90] sm:$0xff]
    %v1013 = vld [vmem:[%s993 + $0x98] sm:$0xff]
    %v1014 = vld [vmem:[%s993 + $0xa0] sm:$0xff]
    %v1015 = vld [vmem:[%s993 + $0xa8] sm:$0xff]
    %v1016 = vld [vmem:[%s993 + $0xb0] sm:$0xff]
    %v1017 = vld [vmem:[%s993 + $0xb8] sm:$0xff]
    %v1018 = vld [vmem:[%s993 + $0xc0] sm:$0xff]
    %v1019 = vld [vmem:[%s993 + $0xc8] sm:$0xff]
    %v1020 = vld [vmem:[%s993 + $0xd0] sm:$0xff]
    %v1021 = vld [vmem:[%s993 + $0xd8] sm:$0xff]
    %v1022 = vld [vmem:[%s993 + $0xe0] sm:$0xff]
    %v1023 = vld [vmem:[%s993 + $0xe8] sm:$0xff]
    %v1024 = vld [vmem:[%s993 + $0xf0] sm:$0xff]
    %v1025 = vld [vmem:[%s993 + $0xf8] sm:$0xff]
    %v1026 = vld [vmem:[%s993 + $0x100] sm:$0xff]
    %v1027 = vld [vmem:[%s993 + $0x108] sm:$0xff]
    %v1028 = vld [vmem:[%s993 + $0x110] sm:$0xff]
    %v1029 = vld [vmem:[%s993 + $0x118] sm:$0xff]
    %v1030 = vld [vmem:[%s993 + $0x120] sm:$0xff]
    %v1031 = vld [vmem:[%s993 + $0x128] sm:$0xff]
    %v1032 = vld [vmem:[%s993 + $0x130] sm:$0xff]
    %v1033 = vld [vmem:[%s993 + $0x138] sm:$0xff]
    %v1034 = vld [vmem:[%s993 + $0x140] sm:$0xff]
    %v1035 = vld [vmem:[%s993 + $0x148] sm:$0xff]
    %v1036 = vld [vmem:[%s993 + $0x150] sm:$0xff]
    %v1037 = vld [vmem:[%s993 + $0x158] sm:$0xff]
    %v1038 = vld [vmem:[%s993 + $0x160] sm:$0xff]
    %v1039 = vld [vmem:[%s993 + $0x168] sm:$0xff]
    %v1040 = vld [vmem:[%s993 + $0x170] sm:$0xff]
    %v1041 = vld [vmem:[%s993 + $0x178] sm:$0xff]
    %v1042 = vld [vmem:[%s993 + $0x180] sm:$0xff]
    %v1043 = vld [vmem:[%s993 + $0x188] sm:$0xff]
    %v1044 = vld [vmem:[%s993 + $0x190] sm:$0xff]
    %v1045 = vld [vmem:[%s993 + $0x198] sm:$0xff]
    %v1046 = vld [vmem:[%s993 + $0x1a0] sm:$0xff]
    %v1047 = vld [vmem:[%s993 + $0x1a8] sm:$0xff]
    %v1048 = vld [vmem:[%s993 + $0x1b0] sm:$0xff]
    %v1049 = vld [vmem:[%s993 + $0x1b8] sm:$0xff]
    %v1050 = vld [vmem:[%s993 + $0x1c0] sm:$0xff]
    %v1051 = vld [vmem:[%s993 + $0x1c8] sm:$0xff]
    %v1052 = vld [vmem:[%s993 + $0x1d0] sm:$0xff]
    %v1053 = vld [vmem:[%s993 + $0x1d8] sm:$0xff]
    %v1054 = vld [vmem:[%s993 + $0x1e0] sm:$0xff]
    %v1055 = vld [vmem:[%s993 + $0x1e8] sm:$0xff]
    %v1056 = vld [vmem:[%s993 + $0x1f0] sm:$0xff]
    %v1057 = vld [vmem:[%s993 + $0x1f8] sm:$0xff]
    %1058 = vmatpush.msra.mxu0 %v1024
    %1059 = vmatpush.msra.mxu0 %v1022
    %1060 = vmatpush.msra.mxu0 %v1020
    %1061 = vmatpush.msra.mxu0 %v1018
    %1062 = vmatpush.msra.mxu0 %v1016
    %1063 = vmatpush.msra.mxu0 %v1014
    %1064 = vmatpush.msra.mxu0 %v1012
    %1065 = vmatpush.msra.mxu0 %v1010
    %1066 = vmatpush.msra.mxu0 %v1008
    %1067 = vmatpush.msra.mxu0 %v1006
    %1068 = vmatpush.msra.mxu0 %v1004
    %1069 = vmatpush.msra.mxu0 %v1002
    %1070 = vmatpush.msra.mxu0 %v1000
    %1071 = vmatpush.msra.mxu0 %v998
    %1072 = vmatpush.msra.mxu0 %v996
    %1073 = vmatpush.msra.mxu0 %v994
    %1074 = vmatmul.f32.gmra.mxu0 %v967
    %v1075 = vpop.f32.mrf.mxu0
    %v1076 = vadd.f32 0.0, %v1075
    %1077 = vmatmul.f32.gmra.mxu0 %v972
    %v1078 = vpop.f32.mrf.mxu0
    %v1079 = vadd.f32 0.0, %v1078
    %1080 = vmatmul.f32.gmra.mxu0 %v977
    %v1081 = vpop.f32.mrf.mxu0
    %v1082 = vadd.f32 0.0, %v1081
    %1083 = vmatmul.f32.gmra.mxu0 %v982
    %v1084 = vpop.f32.mrf.mxu0
    %v1085 = vadd.f32 0.0, %v1084
    %1086 = vdwg.mxu0
    %1087 = vmatpush.msra.mxu0 %v1056
    %1088 = vmatpush.msra.mxu0 %v1054
    %1089 = vmatpush.msra.mxu0 %v1052
    %1090 = vmatpush.msra.mxu0 %v1050
    %1091 = vmatpush.msra.mxu0 %v1048
    %1092 = vmatpush.msra.mxu0 %v1046
    %1093 = vmatpush.msra.mxu0 %v1044
    %1094 = vmatpush.msra.mxu0 %v1042
    %1095 = vmatpush.msra.mxu0 %v1040
    %1096 = vmatpush.msra.mxu0 %v1038
    %1097 = vmatpush.msra.mxu0 %v1036
    %1098 = vmatpush.msra.mxu0 %v1034
    %1099 = vmatpush.msra.mxu0 %v1032
    %1100 = vmatpush.msra.mxu0 %v1030
    %1101 = vmatpush.msra.mxu0 %v1028
    %1102 = vmatpush.msra.mxu0 %v1026
    %1103 = vmatmul.f32.gmra.mxu0 %v970
    %v1104 = vpop.f32.mrf.mxu0
    %v1105 = vadd.f32 %v1076, %v1104
    %1106 = vmatmul.f32.gmra.mxu0 %v974
    %v1107 = vpop.f32.mrf.mxu0
    %v1108 = vadd.f32 %v1079, %v1107
    %1109 = vmatmul.f32.gmra.mxu0 %v980
    %v1110 = vpop.f32.mrf.mxu0
    %v1111 = vadd.f32 %v1082, %v1110
    %1112 = vmatmul.f32.gmra.mxu0 %v984
    %v1113 = vpop.f32.mrf.mxu0
    %v1114 = vadd.f32 %v1085, %v1113
    %1115 = vdwg.mxu0
    %1116 = vmatpush.msra.mxu0 %v1025
    %1117 = vmatpush.msra.mxu0 %v1023
    %1118 = vmatpush.msra.mxu0 %v1021
    %1119 = vmatpush.msra.mxu0 %v1019
    %1120 = vmatpush.msra.mxu0 %v1017
    %1121 = vmatpush.msra.mxu0 %v1015
    %1122 = vmatpush.msra.mxu0 %v1013
    %1123 = vmatpush.msra.mxu0 %v1011
    %1124 = vmatpush.msra.mxu0 %v1009
    %1125 = vmatpush.msra.mxu0 %v1007
    %1126 = vmatpush.msra.mxu0 %v1005
    %1127 = vmatpush.msra.mxu0 %v1003
    %1128 = vmatpush.msra.mxu0 %v1001
    %1129 = vmatpush.msra.mxu0 %v999
    %1130 = vmatpush.msra.mxu0 %v997
    %1131 = vmatpush.msra.mxu0 %v995
    %1132 = vmatmul.f32.gmra.mxu0 %v967
    %v1133 = vpop.f32.mrf.mxu0
    %v1134 = vadd.f32 0.0, %v1133
    %1135 = vmatmul.f32.gmra.mxu0 %v972
    %v1136 = vpop.f32.mrf.mxu0
    %v1137 = vadd.f32 0.0, %v1136
    %1138 = vmatmul.f32.gmra.mxu0 %v977
    %v1139 = vpop.f32.mrf.mxu0
    %v1140 = vadd.f32 0.0, %v1139
    %1141 = vmatmul.f32.gmra.mxu0 %v982
    %v1142 = vpop.f32.mrf.mxu0
    %v1143 = vadd.f32 0.0, %v1142
    %1144 = vdwg.mxu0
    %1145 = vmatpush.msra.mxu0 %v1057
    %1146 = vmatpush.msra.mxu0 %v1055
    %1147 = vmatpush.msra.mxu0 %v1053
    %1148 = vmatpush.msra.mxu0 %v1051
    %1149 = vmatpush.msra.mxu0 %v1049
    %1150 = vmatpush.msra.mxu0 %v1047
    %1151 = vmatpush.msra.mxu0 %v1045
    %1152 = vmatpush.msra.mxu0 %v1043
    %1153 = vmatpush.msra.mxu0 %v1041
    %1154 = vmatpush.msra.mxu0 %v1039
    %1155 = vmatpush.msra.mxu0 %v1037
    %1156 = vmatpush.msra.mxu0 %v1035
    %1157 = vmatpush.msra.mxu0 %v1033
    %1158 = vmatpush.msra.mxu0 %v1031
    %1159 = vmatpush.msra.mxu0 %v1029
    %1160 = vmatpush.msra.mxu0 %v1027
    %1161 = vmatmul.f32.gmra.mxu0 %v970
    %v1162 = vpop.f32.mrf.mxu0
    %v1163 = vadd.f32 %v1134, %v1162
    %1164 = vmatmul.f32.gmra.mxu0 %v974
    %v1165 = vpop.f32.mrf.mxu0
    %v1166 = vadd.f32 %v1137, %v1165
    %1167 = vmatmul.f32.gmra.mxu0 %v980
    %v1168 = vpop.f32.mrf.mxu0
    %v1169 = vadd.f32 %v1140, %v1168
    %1170 = vmatmul.f32.gmra.mxu0 %v984
    %v1171 = vpop.f32.mrf.mxu0
    %v1172 = vadd.f32 %v1143, %v1171
    %1173 = vdwg.mxu0
    %v1174 = vadd.f32 %v932, %v1105
    %v1175 = vadd.f32 %v933, %v1163
    %v1176 = vadd.f32 %v934, %v1108
    %v1177 = vadd.f32 %v935, %v1166
    %v1178 = vadd.f32 %v936, %v1111
    %v1179 = vadd.f32 %v937, %v1169
    %v1180 = vadd.f32 %v938, %v1114
    %v1181 = vadd.f32 %v939, %v1172
    %v1182 = vld [vmem:[#allocation3] sm:$0xfc]
    %v1183 = vld [vmem:[#allocation3 + $0x8] sm:$0xfc]
    %v1184 = vld [vmem:[#allocation3 + $0x20] sm:$0x3]
    %v1185 = vld [vmem:[#allocation3 + $0x28] sm:$0x3]
    %v1186 = vld [vmem:[#allocation3 + $0x30] sm:$0xfc]
    %v1187 = vld [vmem:[#allocation3 + $0x38] sm:$0xfc]
    %v1188 = vld [vmem:[#allocation3 + $0x50] sm:$0x3]
    %v1189 = vld [vmem:[#allocation3 + $0x58] sm:$0x3]
    %vm1198 = vcmask 1045504
    %v1199 = vrot.slane %v1182, 2
    %v1200 = vrot.slane %v942, 2
    %v1201 = vsel %vm1198, %v1199, %v1200
    %v1202 = vrot.slane %v1183, 2
    %v1203 = vrot.slane %v943, 2
    %v1204 = vsel %vm1198, %v1202, %v1203
    %v1205 = vrot.slane %v1184, 2
    %v1206 = vsel %vm1198, %v1200, %v1205
    %v1207 = vrot.slane %v1185, 2
    %v1208 = vsel %vm1198, %v1203, %v1207
    %v1209 = vrot.slane %v1186, 2
    %v1210 = vrot.slane %v948, 2
    %v1211 = vsel %vm1198, %v1209, %v1210
    %v1212 = vrot.slane %v1187, 2
    %v1213 = vrot.slane %v949, 2
    %v1214 = vsel %vm1198, %v1212, %v1213
    %v1215 = vrot.slane %v1188, 2
    %v1216 = vsel %vm1198, %v1210, %v1215
    %v1217 = vrot.slane %v1189, 2
    %v1218 = vsel %vm1198, %v1213, %v1217
    %s1227 = scalar_lea.vmem [#allocation6], 1024
    %v1228 = vld [vmem:[%s1227] sm:$0xff]
    %v1229 = vld [vmem:[%s1227 + $0x8] sm:$0xff]
    %v1230 = vld [vmem:[%s1227 + $0x10] sm:$0xff]
    %v1231 = vld [vmem:[%s1227 + $0x18] sm:$0xff]
    %v1232 = vld [vmem:[%s1227 + $0x20] sm:$0xff]
    %v1233 = vld [vmem:[%s1227 + $0x28] sm:$0xff]
    %v1234 = vld [vmem:[%s1227 + $0x30] sm:$0xff]
    %v1235 = vld [vmem:[%s1227 + $0x38] sm:$0xff]
    %v1236 = vld [vmem:[%s1227 + $0x40] sm:$0xff]
    %v1237 = vld [vmem:[%s1227 + $0x48] sm:$0xff]
    %v1238 = vld [vmem:[%s1227 + $0x50] sm:$0xff]
    %v1239 = vld [vmem:[%s1227 + $0x58] sm:$0xff]
    %v1240 = vld [vmem:[%s1227 + $0x60] sm:$0xff]
    %v1241 = vld [vmem:[%s1227 + $0x68] sm:$0xff]
    %v1242 = vld [vmem:[%s1227 + $0x70] sm:$0xff]
    %v1243 = vld [vmem:[%s1227 + $0x78] sm:$0xff]
    %v1244 = vld [vmem:[%s1227 + $0x80] sm:$0xff]
    %v1245 = vld [vmem:[%s1227 + $0x88] sm:$0xff]
    %v1246 = vld [vmem:[%s1227 + $0x90] sm:$0xff]
    %v1247 = vld [vmem:[%s1227 + $0x98] sm:$0xff]
    %v1248 = vld [vmem:[%s1227 + $0xa0] sm:$0xff]
    %v1249 = vld [vmem:[%s1227 + $0xa8] sm:$0xff]
    %v1250 = vld [vmem:[%s1227 + $0xb0] sm:$0xff]
    %v1251 = vld [vmem:[%s1227 + $0xb8] sm:$0xff]
    %v1252 = vld [vmem:[%s1227 + $0xc0] sm:$0xff]
    %v1253 = vld [vmem:[%s1227 + $0xc8] sm:$0xff]
    %v1254 = vld [vmem:[%s1227 + $0xd0] sm:$0xff]
    %v1255 = vld [vmem:[%s1227 + $0xd8] sm:$0xff]
    %v1256 = vld [vmem:[%s1227 + $0xe0] sm:$0xff]
    %v1257 = vld [vmem:[%s1227 + $0xe8] sm:$0xff]
    %v1258 = vld [vmem:[%s1227 + $0xf0] sm:$0xff]
    %v1259 = vld [vmem:[%s1227 + $0xf8] sm:$0xff]
    %v1260 = vld [vmem:[%s1227 + $0x100] sm:$0xff]
    %v1261 = vld [vmem:[%s1227 + $0x108] sm:$0xff]
    %v1262 = vld [vmem:[%s1227 + $0x110] sm:$0xff]
    %v1263 = vld [vmem:[%s1227 + $0x118] sm:$0xff]
    %v1264 = vld [vmem:[%s1227 + $0x120] sm:$0xff]
    %v1265 = vld [vmem:[%s1227 + $0x128] sm:$0xff]
    %v1266 = vld [vmem:[%s1227 + $0x130] sm:$0xff]
    %v1267 = vld [vmem:[%s1227 + $0x138] sm:$0xff]
    %v1268 = vld [vmem:[%s1227 + $0x140] sm:$0xff]
    %v1269 = vld [vmem:[%s1227 + $0x148] sm:$0xff]
    %v1270 = vld [vmem:[%s1227 + $0x150] sm:$0xff]
    %v1271 = vld [vmem:[%s1227 + $0x158] sm:$0xff]
    %v1272 = vld [vmem:[%s1227 + $0x160] sm:$0xff]
    %v1273 = vld [vmem:[%s1227 + $0x168] sm:$0xff]
    %v1274 = vld [vmem:[%s1227 + $0x170] sm:$0xff]
    %v1275 = vld [vmem:[%s1227 + $0x178] sm:$0xff]
    %v1276 = vld [vmem:[%s1227 + $0x180] sm:$0xff]
    %v1277 = vld [vmem:[%s1227 + $0x188] sm:$0xff]
    %v1278 = vld [vmem:[%s1227 + $0x190] sm:$0xff]
    %v1279 = vld [vmem:[%s1227 + $0x198] sm:$0xff]
    %v1280 = vld [vmem:[%s1227 + $0x1a0] sm:$0xff]
    %v1281 = vld [vmem:[%s1227 + $0x1a8] sm:$0xff]
    %v1282 = vld [vmem:[%s1227 + $0x1b0] sm:$0xff]
    %v1283 = vld [vmem:[%s1227 + $0x1b8] sm:$0xff]
    %v1284 = vld [vmem:[%s1227 + $0x1c0] sm:$0xff]
    %v1285 = vld [vmem:[%s1227 + $0x1c8] sm:$0xff]
    %v1286 = vld [vmem:[%s1227 + $0x1d0] sm:$0xff]
    %v1287 = vld [vmem:[%s1227 + $0x1d8] sm:$0xff]
    %v1288 = vld [vmem:[%s1227 + $0x1e0] sm:$0xff]
    %v1289 = vld [vmem:[%s1227 + $0x1e8] sm:$0xff]
    %v1290 = vld [vmem:[%s1227 + $0x1f0] sm:$0xff]
    %v1291 = vld [vmem:[%s1227 + $0x1f8] sm:$0xff]
    %1292 = vmatpush.msra.mxu0 %v1258
    %1293 = vmatpush.msra.mxu0 %v1256
    %1294 = vmatpush.msra.mxu0 %v1254
    %1295 = vmatpush.msra.mxu0 %v1252
    %1296 = vmatpush.msra.mxu0 %v1250
    %1297 = vmatpush.msra.mxu0 %v1248
    %1298 = vmatpush.msra.mxu0 %v1246
    %1299 = vmatpush.msra.mxu0 %v1244
    %1300 = vmatpush.msra.mxu0 %v1242
    %1301 = vmatpush.msra.mxu0 %v1240
    %1302 = vmatpush.msra.mxu0 %v1238
    %1303 = vmatpush.msra.mxu0 %v1236
    %1304 = vmatpush.msra.mxu0 %v1234
    %1305 = vmatpush.msra.mxu0 %v1232
    %1306 = vmatpush.msra.mxu0 %v1230
    %1307 = vmatpush.msra.mxu0 %v1228
    %1308 = vmatmul.f32.gmra.mxu0 %v1201
    %v1309 = vpop.f32.mrf.mxu0
    %v1310 = vadd.f32 0.0, %v1309
    %1311 = vmatmul.f32.gmra.mxu0 %v1206
    %v1312 = vpop.f32.mrf.mxu0
    %v1313 = vadd.f32 0.0, %v1312
    %1314 = vmatmul.f32.gmra.mxu0 %v1211
    %v1315 = vpop.f32.mrf.mxu0
    %v1316 = vadd.f32 0.0, %v1315
    %1317 = vmatmul.f32.gmra.mxu0 %v1216
    %v1318 = vpop.f32.mrf.mxu0
    %v1319 = vadd.f32 0.0, %v1318
    %1320 = vdwg.mxu0
    %1321 = vmatpush.msra.mxu0 %v1290
    %1322 = vmatpush.msra.mxu0 %v1288
    %1323 = vmatpush.msra.mxu0 %v1286
    %1324 = vmatpush.msra.mxu0 %v1284
    %1325 = vmatpush.msra.mxu0 %v1282
    %1326 = vmatpush.msra.mxu0 %v1280
    %1327 = vmatpush.msra.mxu0 %v1278
    %1328 = vmatpush.msra.mxu0 %v1276
    %1329 = vmatpush.msra.mxu0 %v1274
    %1330 = vmatpush.msra.mxu0 %v1272
    %1331 = vmatpush.msra.mxu0 %v1270
    %1332 = vmatpush.msra.mxu0 %v1268
    %1333 = vmatpush.msra.mxu0 %v1266
    %1334 = vmatpush.msra.mxu0 %v1264
    %1335 = vmatpush.msra.mxu0 %v1262
    %1336 = vmatpush.msra.mxu0 %v1260
    %1337 = vmatmul.f32.gmra.mxu0 %v1204
    %v1338 = vpop.f32.mrf.mxu0
    %v1339 = vadd.f32 %v1310, %v1338
    %1340 = vmatmul.f32.gmra.mxu0 %v1208
    %v1341 = vpop.f32.mrf.mxu0
    %v1342 = vadd.f32 %v1313, %v1341
    %1343 = vmatmul.f32.gmra.mxu0 %v1214
    %v1344 = vpop.f32.mrf.mxu0
    %v1345 = vadd.f32 %v1316, %v1344
    %1346 = vmatmul.f32.gmra.mxu0 %v1218
    %v1347 = vpop.f32.mrf.mxu0
    %v1348 = vadd.f32 %v1319, %v1347
    %1349 = vdwg.mxu0
    %1350 = vmatpush.msra.mxu0 %v1259
    %1351 = vmatpush.msra.mxu0 %v1257
    %1352 = vmatpush.msra.mxu0 %v1255
    %1353 = vmatpush.msra.mxu0 %v1253
    %1354 = vmatpush.msra.mxu0 %v1251
    %1355 = vmatpush.msra.mxu0 %v1249
    %1356 = vmatpush.msra.mxu0 %v1247
    %1357 = vmatpush.msra.mxu0 %v1245
    %1358 = vmatpush.msra.mxu0 %v1243
    %1359 = vmatpush.msra.mxu0 %v1241
    %1360 = vmatpush.msra.mxu0 %v1239
    %1361 = vmatpush.msra.mxu0 %v1237
    %1362 = vmatpush.msra.mxu0 %v1235
    %1363 = vmatpush.msra.mxu0 %v1233
    %1364 = vmatpush.msra.mxu0 %v1231
    %1365 = vmatpush.msra.mxu0 %v1229
    %1366 = vmatmul.f32.gmra.mxu0 %v1201
    %v1367 = vpop.f32.mrf.mxu0
    %v1368 = vadd.f32 0.0, %v1367
    %1369 = vmatmul.f32.gmra.mxu0 %v1206
    %v1370 = vpop.f32.mrf.mxu0
    %v1371 = vadd.f32 0.0, %v1370
    %1372 = vmatmul.f32.gmra.mxu0 %v1211
    %v1373 = vpop.f32.mrf.mxu0
    %v1374 = vadd.f32 0.0, %v1373
    %1375 = vmatmul.f32.gmra.mxu0 %v1216
    %v1376 = vpop.f32.mrf.mxu0
    %v1377 = vadd.f32 0.0, %v1376
    %1378 = vdwg.mxu0
    %1379 = vmatpush.msra.mxu0 %v1291
    %1380 = vmatpush.msra.mxu0 %v1289
    %1381 = vmatpush.msra.mxu0 %v1287
    %1382 = vmatpush.msra.mxu0 %v1285
    %1383 = vmatpush.msra.mxu0 %v1283
    %1384 = vmatpush.msra.mxu0 %v1281
    %1385 = vmatpush.msra.mxu0 %v1279
    %1386 = vmatpush.msra.mxu0 %v1277
    %1387 = vmatpush.msra.mxu0 %v1275
    %1388 = vmatpush.msra.mxu0 %v1273
    %1389 = vmatpush.msra.mxu0 %v1271
    %1390 = vmatpush.msra.mxu0 %v1269
    %1391 = vmatpush.msra.mxu0 %v1267
    %1392 = vmatpush.msra.mxu0 %v1265
    %1393 = vmatpush.msra.mxu0 %v1263
    %1394 = vmatpush.msra.mxu0 %v1261
    %1395 = vmatmul.f32.gmra.mxu0 %v1204
    %v1396 = vpop.f32.mrf.mxu0
    %v1397 = vadd.f32 %v1368, %v1396
    %1398 = vmatmul.f32.gmra.mxu0 %v1208
    %v1399 = vpop.f32.mrf.mxu0
    %v1400 = vadd.f32 %v1371, %v1399
    %1401 = vmatmul.f32.gmra.mxu0 %v1214
    %v1402 = vpop.f32.mrf.mxu0
    %v1403 = vadd.f32 %v1374, %v1402
    %1404 = vmatmul.f32.gmra.mxu0 %v1218
    %v1405 = vpop.f32.mrf.mxu0
    %v1406 = vadd.f32 %v1377, %v1405
    %1407 = vdwg.mxu0
    %v1408 = vadd.f32 %v1174, %v1339
    %v1409 = vadd.f32 %v1175, %v1397
    %v1410 = vadd.f32 %v1176, %v1342
    %v1411 = vadd.f32 %v1177, %v1400
    %v1412 = vadd.f32 %v1178, %v1345
    %v1413 = vadd.f32 %v1179, %v1403
    %v1414 = vadd.f32 %v1180, %v1348
    %v1415 = vadd.f32 %v1181, %v1406
    %v1416 = vld [vmem:[%s7] sm:$0x7]
    %v1417 = vld [vmem:[%s8] sm:$0x3]
    %v1418 = vadd.f32 %v1408, %v1410
    %v1419 = vadd.f32 %v1418, %v1412
    %v1420 = vadd.f32 %v1419, %v1414
    %v1421 = vrot.slane %v1420, 4
    %v1422 = vadd.f32 %v1420, %v1421
    %v1423 = vrot.slane %v1422, 2
    %v1424 = vadd.f32 %v1422, %v1423
    %v1425 = vrot.slane %v1424, 1
    %v1426 = vadd.f32 %v1424, %v1425
    %1427 = vrot.lane.b32.xlu0 %v1426, 8
    %v1428 = vpop.permute.xlu0 %1427
    %v1429 = vadd.f32 %v1426, %v1428
    %1430 = vrot.lane.b32.xlu0 %v1429, 16
    %v1431 = vpop.permute.xlu0 %1430
    %v1432 = vadd.f32 %v1429, %v1431
    %1433 = vrot.lane.b32.xlu0 %v1432, 32
    %v1434 = vpop.permute.xlu0 %1433
    %v1435 = vadd.f32 %v1432, %v1434
    %1436 = vrot.lane.b32.xlu0 %v1435, 64
    %v1437 = vpop.permute.xlu0 %1436
    %v1438 = vadd.f32 %v1435, %v1437
    %v1439 = vadd.f32 %v1409, %v1411
    %v1440 = vadd.f32 %v1439, %v1413
    %v1441 = vadd.f32 %v1440, %v1415
    %v1442 = vrot.slane %v1441, 4
    %v1443 = vadd.f32 %v1441, %v1442
    %v1444 = vrot.slane %v1443, 2
    %v1445 = vadd.f32 %v1443, %v1444
    %v1446 = vrot.slane %v1445, 1
    %v1447 = vadd.f32 %v1445, %v1446
    %1448 = vrot.lane.b32.xlu0 %v1447, 8
    %v1449 = vpop.permute.xlu0 %1448
    %v1450 = vadd.f32 %v1447, %v1449
    %1451 = vrot.lane.b32.xlu0 %v1450, 16
    %v1452 = vpop.permute.xlu0 %1451
    %v1453 = vadd.f32 %v1450, %v1452
    %1454 = vrot.lane.b32.xlu0 %v1453, 32
    %v1455 = vpop.permute.xlu0 %1454
    %v1456 = vadd.f32 %v1453, %v1455
    %1457 = vrot.lane.b32.xlu0 %v1456, 64
    %v1458 = vpop.permute.xlu0 %1457
    %v1459 = vadd.f32 %v1456, %v1458
    %v1460 = vmul.f32 %v1408, %v1408
    %v1461 = vmul.f32 %v1410, %v1410
    %v1462 = vmul.f32 %v1412, %v1412
    %v1463 = vmul.f32 %v1414, %v1414
    %v1464 = vadd.f32 %v1460, %v1461
    %v1465 = vadd.f32 %v1464, %v1462
    %v1466 = vadd.f32 %v1465, %v1463
    %v1467 = vrot.slane %v1466, 4
    %v1468 = vadd.f32 %v1466, %v1467
    %v1469 = vrot.slane %v1468, 2
    %v1470 = vadd.f32 %v1468, %v1469
    %v1471 = vrot.slane %v1470, 1
    %v1472 = vadd.f32 %v1470, %v1471
    %1473 = vrot.lane.b32.xlu0 %v1472, 8
    %v1474 = vpop.permute.xlu0 %1473
    %v1475 = vadd.f32 %v1472, %v1474
    %1476 = vrot.lane.b32.xlu0 %v1475, 16
    %v1477 = vpop.permute.xlu0 %1476
    %v1478 = vadd.f32 %v1475, %v1477
    %1479 = vrot.lane.b32.xlu0 %v1478, 32
    %v1480 = vpop.permute.xlu0 %1479
    %v1481 = vadd.f32 %v1478, %v1480
    %1482 = vrot.lane.b32.xlu0 %v1481, 64
    %v1483 = vpop.permute.xlu0 %1482
    %v1484 = vadd.f32 %v1481, %v1483
    %v1485 = vmul.f32 %v1409, %v1409
    %v1486 = vmul.f32 %v1411, %v1411
    %v1487 = vmul.f32 %v1413, %v1413
    %v1488 = vmul.f32 %v1415, %v1415
    %v1489 = vadd.f32 %v1485, %v1486
    %v1490 = vadd.f32 %v1489, %v1487
    %v1491 = vadd.f32 %v1490, %v1488
    %v1492 = vrot.slane %v1491, 4
    %v1493 = vadd.f32 %v1491, %v1492
    %v1494 = vrot.slane %v1493, 2
    %v1495 = vadd.f32 %v1493, %v1494
    %v1496 = vrot.slane %v1495, 1
    %v1497 = vadd.f32 %v1495, %v1496
    %1498 = vrot.lane.b32.xlu0 %v1497, 8
    %v1499 = vpop.permute.xlu0 %1498
    %v1500 = vadd.f32 %v1497, %v1499
    %1501 = vrot.lane.b32.xlu0 %v1500, 16
    %v1502 = vpop.permute.xlu0 %1501
    %v1503 = vadd.f32 %v1500, %v1502
    %1504 = vrot.lane.b32.xlu0 %v1503, 32
    %v1505 = vpop.permute.xlu0 %1504
    %v1506 = vadd.f32 %v1503, %v1505
    %1507 = vrot.lane.b32.xlu0 %v1506, 64
    %v1508 = vpop.permute.xlu0 %1507
    %v1509 = vadd.f32 %v1506, %v1508
    %v1510 = vmul.f32 %v1408, %v1409
    %v1511 = vmul.f32 %v1410, %v1411
    %v1512 = vmul.f32 %v1412, %v1413
    %v1513 = vmul.f32 %v1414, %v1415
    %v1514 = vadd.f32 %v1510, %v1511
    %v1515 = vadd.f32 %v1514, %v1512
    %v1516 = vadd.f32 %v1515, %v1513
    %v1517 = vrot.slane %v1516, 4
    %v1518 = vadd.f32 %v1516, %v1517
    %v1519 = vrot.slane %v1518, 2
    %v1520 = vadd.f32 %v1518, %v1519
    %v1521 = vrot.slane %v1520, 1
    %v1522 = vadd.f32 %v1520, %v1521
    %1523 = vrot.lane.b32.xlu0 %v1522, 8
    %v1524 = vpop.permute.xlu0 %1523
    %v1525 = vadd.f32 %v1522, %v1524
    %1526 = vrot.lane.b32.xlu0 %v1525, 16
    %v1527 = vpop.permute.xlu0 %1526
    %v1528 = vadd.f32 %v1525, %v1527
    %1529 = vrot.lane.b32.xlu0 %v1528, 32
    %v1530 = vpop.permute.xlu0 %1529
    %v1531 = vadd.f32 %v1528, %v1530
    %1532 = vrot.lane.b32.xlu0 %v1531, 64
    %v1533 = vpop.permute.xlu0 %1532
    %v1534 = vadd.f32 %v1531, %v1533
    %v1535 = vmul.f32 %v1438, 0.001953125
    %v1536 = vmul.f32 %v1459, 0.001953125
    %v1537 = vmul.f32 %v1484, 0.001953125
    %v1538 = vmul.f32 %v1535, %v1535
    %v1539 = vsub.f32 %v1537, %v1538
    %v1540 = vadd.f32 %v1539, 1e-05
    %v1541 = vmul.f32 %v1509, 0.001953125
    %v1542 = vmul.f32 %v1536, %v1536
    %v1543 = vsub.f32 %v1541, %v1542
    %v1544 = vadd.f32 %v1543, 1e-05
    %v1545 = vmul.f32 %v1534, 0.001953125
    %v1546 = vmul.f32 %v1535, %v1536
    %v1547 = vsub.f32 %v1545, %v1546
    %v1548 = vmul.f32 %v1540, %v1544
    %v1549 = vmul.f32 %v1547, %v1547
    %v1550 = vsub.f32 %v1548, %v1549
    %v1551 = vrsqrt.pop %v1550
    %v1552 = vmul.f32 %v1551, %v1550
    %v1553 = vmul.f32 %v1552, %v1551
    %v1554 = vmul.f32 0.5, %v1553
    %v1555 = vsub.f32 1.5, %v1554
    %v1556 = vmul.f32 %v1551, %v1555
    %v1557 = vmul.f32 %v1550, %v1556
    %vm1558 = vcmp.eq.f32.partialorder %v1550, inf
    %v1559 = vsel %vm1558, %v1550, %v1557
    %vm1560 = vcmp.eq.f32.partialorder %v1550, 0.0
    %v1561 = vand.u32 %v1550, 2147483648
    %v1562 = vsel %vm1560, %v1561, %v1559
    %v1563 = vadd.f32 %v1540, %v1544
    %v1564 = vmul.f32 %v1562, 2.0
    %v1565 = vadd.f32 %v1563, %v1564
    %v1566 = vrsqrt.pop %v1565
    %v1567 = vmul.f32 %v1566, %v1565
    %v1568 = vmul.f32 %v1567, %v1566
    %v1569 = vmul.f32 0.5, %v1568
    %v1570 = vsub.f32 1.5, %v1569
    %v1571 = vmul.f32 %v1566, %v1570
    %v1572 = vmul.f32 %v1565, %v1571
    %vm1573 = vcmp.eq.f32.partialorder %v1565, inf
    %v1574 = vsel %vm1573, %v1565, %v1572
    %vm1575 = vcmp.eq.f32.partialorder %v1565, 0.0
    %v1576 = vand.u32 %v1565, 2147483648
    %v1577 = vsel %vm1575, %v1576, %v1574
    %v1578 = vmul.f32 %v1562, %v1577
    %v1579 = vrcp.pop %v1578
    %v1580 = vmul.f32 %v1578, %v1579
    %v1581 = vsub.f32 1.0, %v1580
    %v1582 = vmul.f32 %v1579, %v1581
    %v1583 = vadd.f32 %v1579, %v1582
    %vm1584 = vweird.f32 %v1578
    %vm1585 = vweird.f32 %v1579
    %vm1586 = vmor %vm1584, %vm1585
    %v1587 = vsel %vm1586, %v1579, %v1583
    %v1588 = vand.u32 2147483647, %v1578
    %vm1589 = vcmp.eq.f32.partialorder %v1588, 8.507059e+37
    %v1590 = vand.u32 %v1578, 2147483648
    %v1591 = vor.u32 1.1754944e-38, %v1590
    %v1592 = vsel %vm1589, %v1591, %v1587
    %v1593 = vmul.f32 1.0, %v1592
    %v1594 = vadd.f32 %v1544, %v1562
    %v1595 = vmul.f32 %v1594, %v1593
    %v1596 = vadd.f32 %v1540, %v1562
    %v1597 = vmul.f32 %v1596, %v1593
    %v1598 = vsub.f32 0.0, %v1547
    %v1599 = vmul.f32 %v1598, %v1593
    %v1600 = vmul.f32 %v1416, %v1595
    %v1602 = vrot.slane %v1599, 6
    %v1604 = vmul.f32 %v1416, %v1602
    %v1606 = vrot.slane %v1604, 2
    %v1608 = vadd.f32 %v1600, %v1606
    %v1609 = vmul.f32 %v1416, %v1599
    %v1611 = vrot.slane %v1597, 6
    %v1613 = vmul.f32 %v1416, %v1611
    %v1615 = vrot.slane %v1613, 2
    %v1617 = vadd.f32 %v1609, %v1615
    %v1619 = vrot.slane %v1595, 6
    %v1621 = vmul.f32 %v1416, %v1619
    %v1622 = vrot.slane %v1599, 7
    %v1624 = vmul.f32 %v1416, %v1622
    %v1626 = vrot.slane %v1624, 7
    %v1628 = vadd.f32 %v1621, %v1626
    %v1629 = vrot.slane %v1597, 7
    %v1631 = vmul.f32 %v1416, %v1629
    %v1633 = vrot.slane %v1631, 7
    %v1635 = vadd.f32 %v1604, %v1633
    %v1636 = vmul.f32 %v1608, %v1535
    %v1637 = vsub.f32 %v1417, %v1636
    %v1638 = vmul.f32 %v1617, %v1536
    %v1639 = vsub.f32 %v1637, %v1638
    %v1641 = vrot.slane %v1535, 6
    %v1643 = vmul.f32 %v1628, %v1641
    %v1645 = vrot.slane %v1643, 1
    %v1647 = vsub.f32 %v1417, %v1645
    %v1649 = vrot.slane %v1536, 6
    %v1651 = vmul.f32 %v1635, %v1649
    %v1653 = vrot.slane %v1651, 1
    %v1655 = vsub.f32 %v1647, %v1653
    %v1656 = vperm.slane %v1608, 0
    %v1657 = vmul.f32 %v1656, %v1408
    %v1658 = vmul.f32 %v1656, %v1410
    %v1659 = vmul.f32 %v1656, %v1412
    %v1660 = vmul.f32 %v1656, %v1414
    %v1661 = vperm.slane %v1617, 0
    %v1662 = vmul.f32 %v1661, %v1409
    %v1663 = vmul.f32 %v1661, %v1411
    %v1664 = vmul.f32 %v1661, %v1413
    %v1665 = vmul.f32 %v1661, %v1415
    %v1666 = vadd.f32 %v1657, %v1662
    %v1667 = vadd.f32 %v1658, %v1663
    %v1668 = vadd.f32 %v1659, %v1664
    %v1669 = vadd.f32 %v1660, %v1665
    %v1670 = vperm.slane %v1639, 0
    %v1671 = vadd.f32 %v1666, %v1670
    %v1672 = vadd.f32 %v1667, %v1670
    %v1673 = vadd.f32 %v1668, %v1670
    %v1674 = vadd.f32 %v1669, %v1670
    %v1675 = vmax.f32 %v1671, 0.0
    %v1676 = vmax.f32 %v1672, 0.0
    %v1677 = vmax.f32 %v1673, 0.0
    %v1678 = vmax.f32 %v1674, 0.0
    %v1679 = vperm.slane %v1628, 2
    %v1680 = vmul.f32 %v1679, %v1408
    %v1681 = vmul.f32 %v1679, %v1410
    %v1682 = vmul.f32 %v1679, %v1412
    %v1683 = vmul.f32 %v1679, %v1414
    %v1684 = vperm.slane %v1635, 2
    %v1685 = vmul.f32 %v1684, %v1409
    %v1686 = vmul.f32 %v1684, %v1411
    %v1687 = vmul.f32 %v1684, %v1413
    %v1688 = vmul.f32 %v1684, %v1415
    %v1689 = vadd.f32 %v1680, %v1685
    %v1690 = vadd.f32 %v1681, %v1686
    %v1691 = vadd.f32 %v1682, %v1687
    %v1692 = vadd.f32 %v1683, %v1688
    %v1693 = vperm.slane %v1655, 1
    %v1694 = vadd.f32 %v1689, %v1693
    %v1695 = vadd.f32 %v1690, %v1693
    %v1696 = vadd.f32 %v1691, %v1693
    %v1697 = vadd.f32 %v1692, %v1693
    %v1698 = vmax.f32 %v1694, 0.0
    %v1699 = vmax.f32 %v1695, 0.0
    %v1700 = vmax.f32 %v1696, 0.0
    %v1701 = vmax.f32 %v1697, 0.0
    %1702 = vst [vmem:[%s9] sm:$0xff] %v1675
    %1703 = vst [vmem:[%s9 + $0x8] sm:$0xff] %v1676
    %1704 = vst [vmem:[%s9 + $0x10] sm:$0xff] %v1677
    %1705 = vst [vmem:[%s9 + $0x18] sm:$0xff] %v1678
    %1706 = vst [vmem:[%s10] sm:$0xff] %v1698
    %1707 = vst [vmem:[%s10 + $0x8] sm:$0xff] %v1699
    %1708 = vst [vmem:[%s10 + $0x10] sm:$0xff] %v1700
    %1709 = vst [vmem:[%s10 + $0x18] sm:$0xff] %v1701
    // Predicated region
    $region46: #{conv_bloc_forward.1} parent=1 // pred_check
      _
    $region47: #{conv_bloc_forward.1} parent=1 // pred_check_branch
      %1711 = sbr.rel (0) target = $region49
    $region48: #{conv_bloc_forward.1} parent=1 // pred_region
      _
    $region49: #{conv_bloc_forward.1} parent=1 // pred_fallthru
      _
    // Predicated region
    $region50: #{conv_bloc_forward.1} parent=1 // pred_check
      _
    $region51: #{conv_bloc_forward.1} parent=1 // pred_check_branch
      %1713 = sbr.rel (0) target = $region53
    $region52: #{conv_bloc_forward.1} parent=1 // pred_region
      _
    $region53: #{conv_bloc_forward.1} parent=1 // pred_fallthru
      _
    // Predicated region
    $region54: #{conv_bloc_forward.1} parent=1 // pred_check
      _
    $region55: #{conv_bloc_forward.1} parent=1 // pred_check_branch
      %1715 = sbr.rel (0) target = $region57
    $region56: #{conv_bloc_forward.1} parent=1 // pred_region
      _
    $region57: #{conv_bloc_forward.1} parent=1 // pred_fallthru
      _
    // Predicated region
    $region58: #{conv_bloc_forward.1} parent=1 // pred_check
      _
    $region59: #{conv_bloc_forward.1} parent=1 // pred_check_branch
      %1717 = sbr.rel (0) target = $region61
    $region60: #{conv_bloc_forward.1} parent=1 // pred_region
      _
    $region61: #{conv_bloc_forward.1} parent=1 // pred_fallthru
      _
    %1718 = vsyncpa [#allocation5], 1
    %1719 = vsyncpa [#allocation7], 1

</llo_original>
